<compile_context>
chip_gen: v7x
topology: tpu7x:2x2x1
jax: 0.10.0
libtpu: 0.0.40
codegen_flags: <defaults>
</compile_context>

<pallas_src>
import jax
import jax.numpy as jnp
from jax.experimental import pallas as pl
from jax.experimental.pallas import tpu as pltpu

_OUT_LANES = 128  # lane-dense output slab width


# ----------------------------------------------------------------------------
# Kernel
# ----------------------------------------------------------------------------
def _omic_mlp_ro_kernel(xd_ref, xo_ref,
                        w1_ref, b1_ref, w2_ref, b2_ref,
                        wr1o_ref, wr1d_ref, br1_ref,
                        wr2_ref, br2_ref,
                        wout_ref, bout_ref,
                        out_ref):
    tb, s, dd = xd_ref.shape

    # --- drug branch: sequence mean-pool fused into one bf16 MXU matmul.
    #   mean_s(xd) @ Wr1[drug]  ==  sum_s( xd[:, s, :] @ (Wr1[drug] / S) )
    # wr1d already holds the 1/S-folded, bf16 drug half of Wr1.
    xd = xd_ref[...]
    if xd.dtype != jnp.bfloat16:
        xd = xd.astype(jnp.bfloat16)          # per-tile cast only (f32 producer)
    zd = jnp.dot(xd.reshape(tb * s, dd), wr1d_ref[...],
                 preferred_element_type=jnp.float32)           # (tb*S, n1) f32
    zd = zd.reshape(tb, s, -1).sum(axis=1)                     # (tb, n1)   f32

    # --- omic encoder MLP: relu(fc1) -> relu(hid) ---
    xo = xo_ref[...]                                           # (tb, inp_dim) f32
    h = jnp.dot(xo, w1_ref[...], preferred_element_type=jnp.float32) + b1_ref[...]
    h = jnp.maximum(h, 0.0)
    h = jnp.dot(h, w2_ref[...], preferred_element_type=jnp.float32) + b2_ref[...]
    h = jnp.maximum(h, 0.0)                                    # (tb, n_omic_last)

    # --- BinaryRegressor (dropout == identity in eval) ---
    # torch.cat((xo, xd), 1) @ Wr1  ==  xo @ Wr1[:n_omic] + mean(xd) @ Wr1[n_omic:]
    z = (jnp.dot(h, wr1o_ref[...], preferred_element_type=jnp.float32)
         + zd + br1_ref[...])
    z = jnp.maximum(z, 0.0)
    z = jnp.dot(z, wr2_ref[...], preferred_element_type=jnp.float32) + br2_ref[...]
    z = jnp.maximum(z, 0.0)

    # Final (n2 -> 1) projection as VPU multiply + lane reduce (wout is a
    # (1, n2) row) -- avoids an almost-empty N=1 MXU pass.
    logits = jnp.sum(z * wout_ref[...], axis=-1, keepdims=True) + bout_ref[...]
    sig = jax.nn.sigmoid(logits)                               # (tb, 1)

    # Lane-dense store: broadcast into the padded (tb, 128) output tile.
    out_ref[...] = jnp.broadcast_to(sig, out_ref.shape).astype(out_ref.dtype)


# ----------------------------------------------------------------------------
# Host-side helpers
# ----------------------------------------------------------------------------
def prepare_params(params, seq_len):
    """One-time host prep: split wr1, fold the mean's 1/S into the drug half
    and store it in bf16 (single-pass MXU matmul against the bf16 xd stream)."""
    (w1, b1, w2, b2, wr1, br1, wr2, br2, wout, bout) = params
    n_omic_last = w2.shape[1]
    wr1o = wr1[:n_omic_last, :]
    wr1d = (wr1[n_omic_last:, :] * (1.0 / float(seq_len))).astype(jnp.bfloat16)
    wout_row = wout.reshape(1, -1)                             # (1, n_nodes2)
    return (w1, b1, w2, b2, wr1o, wr1d, br1, wr2, br2, wout_row, bout)


def _vmem_budget():
    """Generation-aware VMEM limits (v5e/v6e: 128 MiB, v7x: 64 MiB)."""
    try:
        cap = int(getattr(pltpu.get_tpu_info(), "vmem_capacity_bytes",
                          64 * 1024 * 1024))
    except Exception:  # pragma: no cover - conservative fallback
        cap = 64 * 1024 * 1024
    limit = min((cap * 3) // 4, 96 * 1024 * 1024)   # 48 MiB on v7x, 96 MiB on v5e/v6e
    tile_budget = (limit * 7) // 10                 # headroom for Mosaic scratch
    return int(limit), int(tile_budget)


def _pick_tb(B, S, Dd, n1, inp_dim, xd_bytes, fixed_bytes, tile_budget):
    """Largest batch tile (multiple of 8) whose pipelined footprint fits the
    budget; prefers a tb that divides B (no pad, no ragged last block) and
    keeps >= 2 grid steps so v7x's 2 TensorCores both get work."""
    budget = max(tile_budget - 2 * fixed_bytes, 1 << 20)
    per_row = (2 * S * Dd * xd_bytes      # double-buffered xd tile
               + S * n1 * 4               # pooled (tb*S, n1) f32 intermediate
               + 2 * inp_dim * 4          # double-buffered xo tile
               + 2 * _OUT_LANES * 4       # double-buffered output tile
               + 1024)                    # slack for small temporaries
    cap = max(8, min(512, budget // per_row))
    cap = (cap // 8) * 8
    if B >= 16:                            # leave >= 2 grid steps for 2-TC split
        half = ((-(-B // 2)) + 7) // 8 * 8
        cap = min(cap, half)
    cap = max(cap, 8)
    if B % 8 == 0:
        for tb in range(min(cap, B), 7, -8):
            if B % tb == 0:
                return tb
    return min(cap, ((B + 7) // 8) * 8)


def omic_mlp_ro_forward(xo, xd_last_hidden, prepared, *, tb=None):
    """Run the full OmicMlpRo (post-Roberta) forward in one Pallas kernel.

    xd_last_hidden is consumed in whatever dtype the producer emits (ideally
    bf16); no standalone cast / pad pass is made over it here."""
    B, S, Dd = xd_last_hidden.shape
    xo = xo.astype(jnp.float32)
    inp_dim = xo.shape[1]
    (w1, b1, w2, b2, wr1o, wr1d, br1, wr2, br2, wout_row, bout) = prepared
    weights = [w1, b1, w2, b2, wr1o, wr1d, br1, wr2, br2, wout_row, bout]
    n1 = wr1d.shape[1]

    vmem_limit, tile_budget = _vmem_budget()
    fixed_bytes = sum(int(a.size) * a.dtype.itemsize for a in weights)
    if tb is None:
        tb = _pick_tb(B, S, Dd, n1, inp_dim,
                      xd_last_hidden.dtype.itemsize, fixed_bytes, tile_budget)
    tb = int(tb)

    grid_b = pl.cdiv(B, tb)
    b_pad = grid_b * tb
    xd = xd_last_hidden
    if b_pad != B:
        # Rare fallback (B not a multiple of 8 / user-forced tb): pad the tail.
        # Producers should emit a batch that is a multiple of 8 to avoid this.
        xo = jnp.pad(xo, ((0, b_pad - B), (0, 0)))
        xd = jnp.pad(xd, ((0, b_pad - B), (0, 0), (0, 0)))

    def const_spec(a):
        nd = a.ndim
        return pl.BlockSpec(a.shape, lambda i, _nd=nd: (0,) * _nd)

    bytes_accessed = (int(xd.size) * xd.dtype.itemsize
                      + int(xo.size) * 4 + fixed_bytes
                      + b_pad * _OUT_LANES * 4)
    flops = 2 * b_pad * (S * Dd * n1
                         + inp_dim * w1.shape[1]
                         + w1.shape[1] * w2.shape[1]
                         + w2.shape[1] * n1
                         + n1 * wr2.shape[1]
                         + wr2.shape[1])

    out = pl.pallas_call(
        _omic_mlp_ro_kernel,
        out_shape=jax.ShapeDtypeStruct((b_pad, _OUT_LANES), jnp.float32),
        grid_spec=pltpu.PrefetchScalarGridSpec(
            num_scalar_prefetch=0,
            grid=(grid_b,),
            in_specs=[pl.BlockSpec((tb, S, Dd), lambda i: (i, 0, 0)),
                      pl.BlockSpec((tb, inp_dim), lambda i: (i, 0))]
                     + [const_spec(a) for a in weights],
            out_specs=pl.BlockSpec((tb, _OUT_LANES), lambda i: (i, 0)),
        ),
        compiler_params=pltpu.CompilerParams(
            dimension_semantics=("parallel",),
            vmem_limit_bytes=vmem_limit),
        cost_estimate=pl.CostEstimate(flops=int(flops),
                                      transcendentals=int(b_pad),
                                      bytes_accessed=int(bytes_accessed)),
    )(xd, xo, *weights)

    return out[:B, :1]


# ----------------------------------------------------------------------------
# Reference + demo
# ----------------------------------------------------------------------------
def _linear_params(kw, kb, fan_in, fan_out):
    """PyTorch nn.Linear default init: U(-1/sqrt(fan_in), 1/sqrt(fan_in))."""
    bound = 1.0 / float(fan_in) ** 0.5
    w = jax.random.uniform(kw, (fan_in, fan_out), jnp.float32, -bound, bound)
    b = jax.random.uniform(kb, (1, fan_out), jnp.float32, -bound, bound)
    return w, b


def _reference_forward(xo, xd_last_hidden, params):
    """Plain-JAX (f32) reference of the same forward for a sanity check."""
    (w1, b1, w2, b2, wr1, br1, wr2, br2, wout, bout) = params
    xd = jnp.mean(xd_last_hidden, axis=1)
    h = jax.nn.relu(xo @ w1 + b1)
    h = jax.nn.relu(h @ w2 + b2)
    xc = jnp.concatenate([h, xd], axis=1)
    z = jax.nn.relu(xc @ wr1 + br1)
    z = jax.nn.relu(z @ wr2 + br2)
    return jax.nn.sigmoid(z @ wout + bout)


if __name__ == "__main__":
    key = jax.random.PRNGKey(0)

    # Small shapes consistent with the module.
    B, S = 16, 8
    inp_dim = 32                 # omic feature dim
    omic_nodes = [64, 32]        # hps['omic_n_nodes']
    drug_dim = 768               # seyonec/ChemBERTa-zinc-base-v1 hidden size
    n_nodes1, n_nodes2 = 64, 32  # hps['n_nodes1'], hps['n_nodes2']
    reg_inp_dim = omic_nodes[-1] + drug_dim

    keys = jax.random.split(key, 12)
    w1, b1 = _linear_params(keys[0], keys[1], inp_dim, omic_nodes[0])
    w2, b2 = _linear_params(keys[2], keys[3], omic_nodes[0], omic_nodes[1])
    wr1, br1 = _linear_params(keys[4], keys[5], reg_inp_dim, n_nodes1)
    wr2, br2 = _linear_params(keys[6], keys[7], n_nodes1, n_nodes2)
    wout, bout = _linear_params(keys[8], keys[9], n_nodes2, 1)
    params = (w1, b1, w2, b2, wr1, br1, wr2, br2, wout, bout)

    xo = jax.random.normal(keys[10], (B, inp_dim), jnp.float32)
    # The upstream Roberta encoder is modeled as a producer that already emits
    # bf16 hidden states (no extra host-side cast pass inside the wrapper).
    xd_last_hidden = jax.random.normal(
        keys[11], (B, S, drug_dim), jnp.float32).astype(jnp.bfloat16)

    prepared = prepare_params(params, seq_len=S)

    out = omic_mlp_ro_forward(xo, xd_last_hidden, prepared)
    out = jax.block_until_ready(out)

    # Reference consumes the same bf16-rounded xd the kernel sees (f32 weights).
    ref = _reference_forward(xo, xd_last_hidden.astype(jnp.float32), params)

    assert out.shape == (B, 1)
    assert jnp.allclose(out, ref, atol=2e-3, rtol=2e-3)
    print("KERNEL_OK")
</pallas_src>

<mosaic_0001>
module attributes {stable_mosaic.version = 11 : i64} {
  func.func @_omic_mlp_ro_kernel(%arg0: i32, %arg1: memref<8x8x768xbf16, #tpu.memory_space<vmem>>, %arg2: memref<8x32xf32, #tpu.memory_space<vmem>>, %arg3: memref<32x64xf32, #tpu.memory_space<vmem>>, %arg4: memref<1x64xf32, #tpu.memory_space<vmem>>, %arg5: memref<64x32xf32, #tpu.memory_space<vmem>>, %arg6: memref<1x32xf32, #tpu.memory_space<vmem>>, %arg7: memref<32x64xf32, #tpu.memory_space<vmem>>, %arg8: memref<768x64xbf16, #tpu.memory_space<vmem>>, %arg9: memref<1x64xf32, #tpu.memory_space<vmem>>, %arg10: memref<64x32xf32, #tpu.memory_space<vmem>>, %arg11: memref<1x32xf32, #tpu.memory_space<vmem>>, %arg12: memref<1x32xf32, #tpu.memory_space<vmem>>, %arg13: memref<1x1xf32, #tpu.memory_space<vmem>>, %arg14: memref<8x128xf32, #tpu.memory_space<vmem>>) attributes {dimension_semantics = [#tpu.dimension_semantics<parallel>], iteration_bounds = array<i64: 2>, scalar_prefetch = 0 : i64, scratch_operands = 0 : i64, tpu.core_type = #tpu.core_type<tc>, window_params = [{transform_indices = @transform_0, window_bounds = array<i64: 8, 8, 768>}, {transform_indices = @transform_1, window_bounds = array<i64: 8, 32>}, {pipeline_mode = #tpu.pipeline_mode<synchronous>, transform_indices = @transform_2, window_bounds = array<i64: 32, 64>}, {pipeline_mode = #tpu.pipeline_mode<synchronous>, transform_indices = @transform_3, window_bounds = array<i64: 1, 64>}, {pipeline_mode = #tpu.pipeline_mode<synchronous>, transform_indices = @transform_4, window_bounds = array<i64: 64, 32>}, {pipeline_mode = #tpu.pipeline_mode<synchronous>, transform_indices = @transform_5, window_bounds = array<i64: 1, 32>}, {pipeline_mode = #tpu.pipeline_mode<synchronous>, transform_indices = @transform_6, window_bounds = array<i64: 32, 64>}, {pipeline_mode = #tpu.pipeline_mode<synchronous>, transform_indices = @transform_7, window_bounds = array<i64: 768, 64>}, {pipeline_mode = #tpu.pipeline_mode<synchronous>, transform_indices = @transform_8, window_bounds = array<i64: 1, 64>}, {pipeline_mode = #tpu.pipeline_mode<synchronous>, transform_indices = @transform_9, window_bounds = array<i64: 64, 32>}, {pipeline_mode = #tpu.pipeline_mode<synchronous>, transform_indices = @transform_10, window_bounds = array<i64: 1, 32>}, {pipeline_mode = #tpu.pipeline_mode<synchronous>, transform_indices = @transform_11, window_bounds = array<i64: 1, 32>}, {pipeline_mode = #tpu.pipeline_mode<synchronous>, transform_indices = @transform_12, window_bounds = array<i64: 1, 1>}, {transform_indices = @transform_13, window_bounds = array<i64: 8, 128>}]} {
    %c0 = arith.constant 0 : index
    %c0_0 = arith.constant 0 : index
    %c0_1 = arith.constant 0 : index
    %0 = vector.load %arg1[%c0, %c0_0, %c0_1] : memref<8x8x768xbf16, #tpu.memory_space<vmem>>, vector<8x8x768xbf16>
    %1 = vector.shape_cast %0 : vector<8x8x768xbf16> to vector<64x768xbf16>
    %c0_2 = arith.constant 0 : index
    %c0_3 = arith.constant 0 : index
    %2 = vector.load %arg8[%c0_2, %c0_3] : memref<768x64xbf16, #tpu.memory_space<vmem>>, vector<768x64xbf16>
    %cst = arith.constant dense<0.000000e+00> : vector<64x64xf32>
    %3 = tpu.matmul %1, %2, %cst {dimension_numbers = #tpu.dot_dimension_numbers<[1], [0], [0], [1], [0, 0, 1, 1], [], []>} : vector<64x768xbf16>, vector<768x64xbf16>, vector<64x64xf32> -> vector<64x64xf32>
    %4 = vector.shape_cast %3 : vector<64x64xf32> to vector<8x8x64xf32>
    %cst_4 = arith.constant dense<0.000000e+00> : vector<8x64xf32>
    %5 = vector.multi_reduction <add>, %4, %cst_4 [1] : vector<8x8x64xf32> to vector<8x64xf32>
    %c0_5 = arith.constant 0 : index
    %c0_6 = arith.constant 0 : index
    %6 = vector.load %arg2[%c0_5, %c0_6] : memref<8x32xf32, #tpu.memory_space<vmem>>, vector<8x32xf32>
    %c0_7 = arith.constant 0 : index
    %c0_8 = arith.constant 0 : index
    %7 = vector.load %arg3[%c0_7, %c0_8] : memref<32x64xf32, #tpu.memory_space<vmem>>, vector<32x64xf32>
    %cst_9 = arith.constant dense<0.000000e+00> : vector<8x64xf32>
    %8 = tpu.matmul %6, %7, %cst_9 {dimension_numbers = #tpu.dot_dimension_numbers<[1], [0], [0], [1], [0, 0, 1, 1], [], []>} : vector<8x32xf32>, vector<32x64xf32>, vector<8x64xf32> -> vector<8x64xf32>
    %c0_10 = arith.constant 0 : index
    %c0_11 = arith.constant 0 : index
    %9 = vector.load %arg4[%c0_10, %c0_11] : memref<1x64xf32, #tpu.memory_space<vmem>>, vector<1x64xf32>
    %10 = vector.broadcast %9 : vector<1x64xf32> to vector<8x64xf32>
    %11 = arith.addf %8, %10 : vector<8x64xf32>
    %cst_12 = arith.constant 0.000000e+00 : f32
    %12 = vector.broadcast %cst_12 : f32 to vector<8x64xf32>
    %13 = arith.maximumf %11, %12 : vector<8x64xf32>
    %c0_13 = arith.constant 0 : index
    %c0_14 = arith.constant 0 : index
    %14 = vector.load %arg5[%c0_13, %c0_14] : memref<64x32xf32, #tpu.memory_space<vmem>>, vector<64x32xf32>
    %cst_15 = arith.constant dense<0.000000e+00> : vector<8x32xf32>
    %15 = tpu.matmul %13, %14, %cst_15 {dimension_numbers = #tpu.dot_dimension_numbers<[1], [0], [0], [1], [0, 0, 1, 1], [], []>} : vector<8x64xf32>, vector<64x32xf32>, vector<8x32xf32> -> vector<8x32xf32>
    %c0_16 = arith.constant 0 : index
    %c0_17 = arith.constant 0 : index
    %16 = vector.load %arg6[%c0_16, %c0_17] : memref<1x32xf32, #tpu.memory_space<vmem>>, vector<1x32xf32>
    %17 = vector.broadcast %16 : vector<1x32xf32> to vector<8x32xf32>
    %18 = arith.addf %15, %17 : vector<8x32xf32>
    %cst_18 = arith.constant 0.000000e+00 : f32
    %19 = vector.broadcast %cst_18 : f32 to vector<8x32xf32>
    %20 = arith.maximumf %18, %19 : vector<8x32xf32>
    %c0_19 = arith.constant 0 : index
    %c0_20 = arith.constant 0 : index
    %21 = vector.load %arg7[%c0_19, %c0_20] : memref<32x64xf32, #tpu.memory_space<vmem>>, vector<32x64xf32>
    %cst_21 = arith.constant dense<0.000000e+00> : vector<8x64xf32>
    %22 = tpu.matmul %20, %21, %cst_21 {dimension_numbers = #tpu.dot_dimension_numbers<[1], [0], [0], [1], [0, 0, 1, 1], [], []>} : vector<8x32xf32>, vector<32x64xf32>, vector<8x64xf32> -> vector<8x64xf32>
    %23 = arith.addf %22, %5 : vector<8x64xf32>
    %c0_22 = arith.constant 0 : index
    %c0_23 = arith.constant 0 : index
    %24 = vector.load %arg9[%c0_22, %c0_23] : memref<1x64xf32, #tpu.memory_space<vmem>>, vector<1x64xf32>
    %25 = vector.broadcast %24 : vector<1x64xf32> to vector<8x64xf32>
    %26 = arith.addf %23, %25 : vector<8x64xf32>
    %cst_24 = arith.constant 0.000000e+00 : f32
    %27 = vector.broadcast %cst_24 : f32 to vector<8x64xf32>
    %28 = arith.maximumf %26, %27 : vector<8x64xf32>
    %c0_25 = arith.constant 0 : index
    %c0_26 = arith.constant 0 : index
    %29 = vector.load %arg10[%c0_25, %c0_26] : memref<64x32xf32, #tpu.memory_space<vmem>>, vector<64x32xf32>
    %cst_27 = arith.constant dense<0.000000e+00> : vector<8x32xf32>
    %30 = tpu.matmul %28, %29, %cst_27 {dimension_numbers = #tpu.dot_dimension_numbers<[1], [0], [0], [1], [0, 0, 1, 1], [], []>} : vector<8x64xf32>, vector<64x32xf32>, vector<8x32xf32> -> vector<8x32xf32>
    %c0_28 = arith.constant 0 : index
    %c0_29 = arith.constant 0 : index
    %31 = vector.load %arg11[%c0_28, %c0_29] : memref<1x32xf32, #tpu.memory_space<vmem>>, vector<1x32xf32>
    %32 = vector.broadcast %31 : vector<1x32xf32> to vector<8x32xf32>
    %33 = arith.addf %30, %32 : vector<8x32xf32>
    %cst_30 = arith.constant 0.000000e+00 : f32
    %34 = vector.broadcast %cst_30 : f32 to vector<8x32xf32>
    %35 = arith.maximumf %33, %34 : vector<8x32xf32>
    %c0_31 = arith.constant 0 : index
    %c0_32 = arith.constant 0 : index
    %36 = vector.load %arg12[%c0_31, %c0_32] : memref<1x32xf32, #tpu.memory_space<vmem>>, vector<1x32xf32>
    %37 = vector.broadcast %36 : vector<1x32xf32> to vector<8x32xf32>
    %38 = arith.mulf %35, %37 : vector<8x32xf32>
    %cst_33 = arith.constant dense<0.000000e+00> : vector<8xf32>
    %39 = vector.multi_reduction <add>, %38, %cst_33 [1] : vector<8x32xf32> to vector<8xf32>
    %40 = vector.shape_cast %39 : vector<8xf32> to vector<8x1xf32>
    %c0_34 = arith.constant 0 : index
    %c0_35 = arith.constant 0 : index
    %41 = vector.load %arg13[%c0_34, %c0_35] : memref<1x1xf32, #tpu.memory_space<vmem>>, vector<1x1xf32>
    %42 = vector.broadcast %41 : vector<1x1xf32> to vector<8x1xf32>
    %43 = arith.addf %40, %42 : vector<8x1xf32>
    %44 = arith.negf %43 : vector<8x1xf32>
    %45 = math.exp %44 : vector<8x1xf32>
    %cst_36 = arith.constant 1.000000e+00 : f32
    %46 = vector.broadcast %cst_36 : f32 to vector<8x1xf32>
    %47 = arith.addf %46, %45 : vector<8x1xf32>
    %48 = arith.divf %46, %47 : vector<8x1xf32>
    %49 = vector.shape_cast %48 : vector<8x1xf32> to vector<8x1xf32>
    %50 = vector.broadcast %49 : vector<8x1xf32> to vector<8x128xf32>
    %c0_37 = arith.constant 0 : index
    %c0_38 = arith.constant 0 : index
    %51 = vector.load %arg14[%c0_37, %c0_38] : memref<8x128xf32, #tpu.memory_space<vmem>>, vector<8x128xf32>
    tpu.vector_store %arg14[%c0_37, %c0_38], %50 {strides = array<i32>} : memref<8x128xf32, #tpu.memory_space<vmem>>, vector<8x128xf32>,
    return
  }
  func.func @transform_0(%arg0: i32) -> (i32, i32, i32) {
    %c0_i32 = arith.constant 0 : i32
    %c0_i32_0 = arith.constant 0 : i32
    %c0_i32_1 = arith.constant 0 : i32
    return %arg0, %c0_i32, %c0_i32_0 : i32, i32, i32
  }
  func.func @transform_1(%arg0: i32) -> (i32, i32) {
    %c0_i32 = arith.constant 0 : i32
    %c0_i32_0 = arith.constant 0 : i32
    return %arg0, %c0_i32 : i32, i32
  }
  func.func @transform_2(%arg0: i32) -> (i32, i32) {
    %c0_i32 = arith.constant 0 : i32
    %c0_i32_0 = arith.constant 0 : i32
    %c0_i32_1 = arith.constant 0 : i32
    return %c0_i32, %c0_i32_0 : i32, i32
  }
  func.func @transform_3(%arg0: i32) -> (i32, i32) {
    %c0_i32 = arith.constant 0 : i32
    %c0_i32_0 = arith.constant 0 : i32
    %c0_i32_1 = arith.constant 0 : i32
    return %c0_i32, %c0_i32_0 : i32, i32
  }
  func.func @transform_4(%arg0: i32) -> (i32, i32) {
    %c0_i32 = arith.constant 0 : i32
    %c0_i32_0 = arith.constant 0 : i32
    %c0_i32_1 = arith.constant 0 : i32
    return %c0_i32, %c0_i32_0 : i32, i32
  }
  func.func @transform_5(%arg0: i32) -> (i32, i32) {
    %c0_i32 = arith.constant 0 : i32
    %c0_i32_0 = arith.constant 0 : i32
    %c0_i32_1 = arith.constant 0 : i32
    return %c0_i32, %c0_i32_0 : i32, i32
  }
  func.func @transform_6(%arg0: i32) -> (i32, i32) {
    %c0_i32 = arith.constant 0 : i32
    %c0_i32_0 = arith.constant 0 : i32
    %c0_i32_1 = arith.constant 0 : i32
    return %c0_i32, %c0_i32_0 : i32, i32
  }
  func.func @transform_7(%arg0: i32) -> (i32, i32) {
    %c0_i32 = arith.constant 0 : i32
    %c0_i32_0 = arith.constant 0 : i32
    %c0_i32_1 = arith.constant 0 : i32
    return %c0_i32, %c0_i32_0 : i32, i32
  }
  func.func @transform_8(%arg0: i32) -> (i32, i32) {
    %c0_i32 = arith.constant 0 : i32
    %c0_i32_0 = arith.constant 0 : i32
    %c0_i32_1 = arith.constant 0 : i32
    return %c0_i32, %c0_i32_0 : i32, i32
  }
  func.func @transform_9(%arg0: i32) -> (i32, i32) {
    %c0_i32 = arith.constant 0 : i32
    %c0_i32_0 = arith.constant 0 : i32
    %c0_i32_1 = arith.constant 0 : i32
    return %c0_i32, %c0_i32_0 : i32, i32
  }
  func.func @transform_10(%arg0: i32) -> (i32, i32) {
    %c0_i32 = arith.constant 0 : i32
    %c0_i32_0 = arith.constant 0 : i32
    %c0_i32_1 = arith.constant 0 : i32
    return %c0_i32, %c0_i32_0 : i32, i32
  }
  func.func @transform_11(%arg0: i32) -> (i32, i32) {
    %c0_i32 = arith.constant 0 : i32
    %c0_i32_0 = arith.constant 0 : i32
    %c0_i32_1 = arith.constant 0 : i32
    return %c0_i32, %c0_i32_0 : i32, i32
  }
  func.func @transform_12(%arg0: i32) -> (i32, i32) {
    %c0_i32 = arith.constant 0 : i32
    %c0_i32_0 = arith.constant 0 : i32
    %c0_i32_1 = arith.constant 0 : i32
    return %c0_i32, %c0_i32_0 : i32, i32
  }
  func.func @transform_13(%arg0: i32) -> (i32, i32) {
    %c0_i32 = arith.constant 0 : i32
    %c0_i32_0 = arith.constant 0 : i32
    return %arg0, %c0_i32 : i32, i32
  }
}

</mosaic_0001>

<llo_original>
// kernel: tpu_custom_call.1
$region0: #{tpu_custom_call.1}
  #allocation0 [shape = 'u32[]', space=smem, size = 0x4, offset = 0x4, fixed_abs, tag = 'smem constant byte address 0x4 - core index']
  #allocation1 [shape = 'u32[144,128]{1,0:T(1,128)}', space=vmem, size = 0x12000, scoped, tag = 'internal scratch']
  #allocation2 [shape = 'f32[1,1]{1,0:T(1,128)S(1)}', space=vmem, size = 0x200, scoped, tag = 'scoped memory for tpu_custom_call.1']
  %s0 = inlined_call_operand.vmem [shape: bf16[16,8,768], index: 0, kind: input, shape index: {}]
  %s1 = inlined_call_operand.vmem [shape: f32[16,32], index: 1, kind: input, shape index: {}]
  %s2 = inlined_call_operand.vmem [shape: f32[32,64], index: 2, kind: input, shape index: {}]
  %s3 = inlined_call_operand.vmem [shape: f32[1,64], index: 3, kind: input, shape index: {}]
  %s4 = inlined_call_operand.vmem [shape: f32[64,32], index: 4, kind: input, shape index: {}]
  %s5 = inlined_call_operand.vmem [shape: f32[1,32], index: 5, kind: input, shape index: {}]
  %s6 = inlined_call_operand.vmem [shape: f32[32,64], index: 6, kind: input, shape index: {}]
  %s7 = inlined_call_operand.vmem [shape: bf16[768,64], index: 7, kind: input, shape index: {}]
  %s8 = inlined_call_operand.vmem [shape: f32[1,64], index: 8, kind: input, shape index: {}]
  %s9 = inlined_call_operand.vmem [shape: f32[64,32], index: 9, kind: input, shape index: {}]
  %s10 = inlined_call_operand.vmem [shape: f32[1,32], index: 10, kind: input, shape index: {}]
  %s11 = inlined_call_operand.vmem [shape: f32[1,32], index: 11, kind: input, shape index: {}]
  %s12 = inlined_call_operand.<no memory space> [shape: f32[1,1], index: 12, kind: input, shape index: {}]
  %s13 = inlined_call_operand.hbm [shape: f32[16,128], index: 13, kind: output, shape index: {}]
  %s14 = sld [smem:[#allocation0]]
  $region85: #{tpu_custom_call.1} parent=0
    _
  %s16 = ssub.s32 1, %s14
  %s17 = scalar_select 0, %s16, %s14
  %v18 = vstv %s12
  %19 = vst [vmem:[#allocation2] sm:$0x1] %v18
  $region1: #{tpu_custom_call.1} parent=0
    #allocation3 [shape = 'u8[8192]{0}', space=vmem, size = 0x2000, scoped, tag = 'output window, operand 0']
    #allocation4 [shape = 's32[2]{0}', space=sflag, size = 0x8, scoped, tag = 'scoped memory for tpu_custom_call.1']
    %20 = vsyncpa [#allocation4], 0
    %s21 = scalar_lea.sflag [#allocation4], 1
    %22 = vsyncpa %s21, 0
    loop: start=0, step=1, limit=4
    $region2: #{tpu_custom_call.1} parent=1 // loop_pre_header
      _
    $region3: #{tpu_custom_call.1} parent=1 // loop_header
      %s24 = sphi 0, %s28
      %p25 = scmp.ge.s32.totalorder %s24, 4
      %s34 = sphi 0, %s36
      %s37 = sphi 0, %s34
      %s38 = sphi 0, %s37
      %s54 = sphi 0, %s38
      %s60 = sphi 0, %s62
      %s63 = sphi 0, %s60
      %s64 = sphi 0, %s63
      %s80 = sphi 0, %s64
      %s84 = sphi 0, %s84
      %s86 = sphi 0, %s84
      %s87 = sphi 0, %s86
      %s101 = sphi 0, %s87
      %s105 = sphi 0, %s105
      %s107 = sphi 0, %s105
      %s108 = sphi 0, %s107
      %s122 = sphi 0, %s108
      %s126 = sphi 0, %s126
      %s128 = sphi 0, %s126
      %s129 = sphi 0, %s128
      %s143 = sphi 0, %s129
      %s147 = sphi 0, %s147
      %s149 = sphi 0, %s147
      %s150 = sphi 0, %s149
      %s164 = sphi 0, %s150
      %s168 = sphi 0, %s168
      %s170 = sphi 0, %s168
      %s171 = sphi 0, %s170
      %s185 = sphi 0, %s171
      %s189 = sphi 0, %s189
      %s191 = sphi 0, %s189
      %s192 = sphi 0, %s191
      %s206 = sphi 0, %s192
      %s210 = sphi 0, %s210
      %s212 = sphi 0, %s210
      %s213 = sphi 0, %s212
      %s227 = sphi 0, %s213
      %s231 = sphi 0, %s231
      %s233 = sphi 0, %s231
      %s234 = sphi 0, %s233
      %s248 = sphi 0, %s234
      %s252 = sphi 0, %s252
      %s254 = sphi 0, %s252
      %s255 = sphi 0, %s254
      %s269 = sphi 0, %s255
      %s273 = sphi 0, %s273
      %s275 = sphi 0, %s273
      %s276 = sphi 0, %s275
      %s290 = sphi 0, %s276
      %s294 = sphi 0, %s294
      %s296 = sphi 0, %s294
      %s297 = sphi 0, %s296
      %s311 = sphi 0, %s297
      %s317 = sphi 0, %s319
      %s320 = sphi 0, %s317
      %s321 = sphi 0, %s320
      %s337 = sphi 0, %s321
    $region4: #{tpu_custom_call.1} parent=1 // loop_header_branch
      %27 = sbr.rel (%p25) target = $region8
    $region5: #{tpu_custom_call.1} parent=1 // loop_body
      %s29 = ssub.s32 %s24, 1
      %s30 = ssub.s32 %s24, 2
      %s31 = sadd.s32 %s24, 1
      %s32 = ssub.s32 %s24, %s31
      %p33 = scmp.eq.s32.totalorder %s32, 0
      %s35 = sadd.s32 %s34, 1
      %s36 = scalar_select %p33, %s34, %s35
      %p39 = pneg %p33
      %p40 = scmp.eq.s32.totalorder %s24, 1
      %p41 = por %p39, %p40
      %p42 = scmp.ne.s32.totalorder %s34, %s37
      %p43 = scmp.eq.s32.totalorder %s24, 0
      %p44 = por %p42, %p43
      %p45 = scmp.ne.s32.totalorder %s34, %s37
      %p46 = scmp.eq.s32.totalorder %s29, 1
      %p47 = por %p45, %p46
      %p48 = scmp.ne.s32.totalorder %s37, %s38
      %p49 = scmp.eq.s32.totalorder %s29, 0
      %p50 = por %p48, %p49
      %p51 = scmp.ne.s32.totalorder %s37, %s38
      %p52 = scmp.eq.s32.totalorder %s30, 1
      %p53 = por %p51, %p52
      %p55 = scmp.ne.s32.totalorder %s38, %s54
      %p56 = scmp.eq.s32.totalorder %s30, 0
      %p57 = por %p55, %p56
      %s58 = ssub.s32 %s24, %s31
      %p59 = scmp.eq.s32.totalorder %s58, 0
      %s61 = sadd.s32 %s60, 1
      %s62 = scalar_select %p59, %s60, %s61
      %p65 = pneg %p59
      %p66 = scmp.eq.s32.totalorder %s24, 1
      %p67 = por %p65, %p66
      %p68 = scmp.ne.s32.totalorder %s60, %s63
      %p69 = scmp.eq.s32.totalorder %s24, 0
      %p70 = por %p68, %p69
      %p71 = scmp.ne.s32.totalorder %s60, %s63
      %p72 = scmp.eq.s32.totalorder %s29, 1
      %p73 = por %p71, %p72
      %p74 = scmp.ne.s32.totalorder %s63, %s64
      %p75 = scmp.eq.s32.totalorder %s29, 0
      %p76 = por %p74, %p75
      %p77 = scmp.ne.s32.totalorder %s63, %s64
      %p78 = scmp.eq.s32.totalorder %s30, 1
      %p79 = por %p77, %p78
      %p81 = scmp.ne.s32.totalorder %s64, %s80
      %p82 = scmp.eq.s32.totalorder %s30, 0
      %p83 = por %p81, %p82
      %s85 = sadd.s32 %s84, 1
      %p88 = scmp.eq.s32.totalorder %s24, 1
      %p89 = scmp.ne.s32.totalorder %s84, %s86
      %p90 = scmp.eq.s32.totalorder %s24, 0
      %p91 = por %p89, %p90
      %p92 = scmp.ne.s32.totalorder %s84, %s86
      %p93 = scmp.eq.s32.totalorder %s29, 1
      %p94 = por %p92, %p93
      %p95 = scmp.ne.s32.totalorder %s86, %s87
      %p96 = scmp.eq.s32.totalorder %s29, 0
      %p97 = por %p95, %p96
      %p98 = scmp.ne.s32.totalorder %s86, %s87
      %p99 = scmp.eq.s32.totalorder %s30, 1
      %p100 = por %p98, %p99
      %p102 = scmp.ne.s32.totalorder %s87, %s101
      %p103 = scmp.eq.s32.totalorder %s30, 0
      %p104 = por %p102, %p103
      %s106 = sadd.s32 %s105, 1
      %p109 = scmp.eq.s32.totalorder %s24, 1
      %p110 = scmp.ne.s32.totalorder %s105, %s107
      %p111 = scmp.eq.s32.totalorder %s24, 0
      %p112 = por %p110, %p111
      %p113 = scmp.ne.s32.totalorder %s105, %s107
      %p114 = scmp.eq.s32.totalorder %s29, 1
      %p115 = por %p113, %p114
      %p116 = scmp.ne.s32.totalorder %s107, %s108
      %p117 = scmp.eq.s32.totalorder %s29, 0
      %p118 = por %p116, %p117
      %p119 = scmp.ne.s32.totalorder %s107, %s108
      %p120 = scmp.eq.s32.totalorder %s30, 1
      %p121 = por %p119, %p120
      %p123 = scmp.ne.s32.totalorder %s108, %s122
      %p124 = scmp.eq.s32.totalorder %s30, 0
      %p125 = por %p123, %p124
      %s127 = sadd.s32 %s126, 1
      %p130 = scmp.eq.s32.totalorder %s24, 1
      %p131 = scmp.ne.s32.totalorder %s126, %s128
      %p132 = scmp.eq.s32.totalorder %s24, 0
      %p133 = por %p131, %p132
      %p134 = scmp.ne.s32.totalorder %s126, %s128
      %p135 = scmp.eq.s32.totalorder %s29, 1
      %p136 = por %p134, %p135
      %p137 = scmp.ne.s32.totalorder %s128, %s129
      %p138 = scmp.eq.s32.totalorder %s29, 0
      %p139 = por %p137, %p138
      %p140 = scmp.ne.s32.totalorder %s128, %s129
      %p141 = scmp.eq.s32.totalorder %s30, 1
      %p142 = por %p140, %p141
      %p144 = scmp.ne.s32.totalorder %s129, %s143
      %p145 = scmp.eq.s32.totalorder %s30, 0
      %p146 = por %p144, %p145
      %s148 = sadd.s32 %s147, 1
      %p151 = scmp.eq.s32.totalorder %s24, 1
      %p152 = scmp.ne.s32.totalorder %s147, %s149
      %p153 = scmp.eq.s32.totalorder %s24, 0
      %p154 = por %p152, %p153
      %p155 = scmp.ne.s32.totalorder %s147, %s149
      %p156 = scmp.eq.s32.totalorder %s29, 1
      %p157 = por %p155, %p156
      %p158 = scmp.ne.s32.totalorder %s149, %s150
      %p159 = scmp.eq.s32.totalorder %s29, 0
      %p160 = por %p158, %p159
      %p161 = scmp.ne.s32.totalorder %s149, %s150
      %p162 = scmp.eq.s32.totalorder %s30, 1
      %p163 = por %p161, %p162
      %p165 = scmp.ne.s32.totalorder %s150, %s164
      %p166 = scmp.eq.s32.totalorder %s30, 0
      %p167 = por %p165, %p166
      %s169 = sadd.s32 %s168, 1
      %p172 = scmp.eq.s32.totalorder %s24, 1
      %p173 = scmp.ne.s32.totalorder %s168, %s170
      %p174 = scmp.eq.s32.totalorder %s24, 0
      %p175 = por %p173, %p174
      %p176 = scmp.ne.s32.totalorder %s168, %s170
      %p177 = scmp.eq.s32.totalorder %s29, 1
      %p178 = por %p176, %p177
      %p179 = scmp.ne.s32.totalorder %s170, %s171
      %p180 = scmp.eq.s32.totalorder %s29, 0
      %p181 = por %p179, %p180
      %p182 = scmp.ne.s32.totalorder %s170, %s171
      %p183 = scmp.eq.s32.totalorder %s30, 1
      %p184 = por %p182, %p183
      %p186 = scmp.ne.s32.totalorder %s171, %s185
      %p187 = scmp.eq.s32.totalorder %s30, 0
      %p188 = por %p186, %p187
      %s190 = sadd.s32 %s189, 1
      %p193 = scmp.eq.s32.totalorder %s24, 1
      %p194 = scmp.ne.s32.totalorder %s189, %s191
      %p195 = scmp.eq.s32.totalorder %s24, 0
      %p196 = por %p194, %p195
      %p197 = scmp.ne.s32.totalorder %s189, %s191
      %p198 = scmp.eq.s32.totalorder %s29, 1
      %p199 = por %p197, %p198
      %p200 = scmp.ne.s32.totalorder %s191, %s192
      %p201 = scmp.eq.s32.totalorder %s29, 0
      %p202 = por %p200, %p201
      %p203 = scmp.ne.s32.totalorder %s191, %s192
      %p204 = scmp.eq.s32.totalorder %s30, 1
      %p205 = por %p203, %p204
      %p207 = scmp.ne.s32.totalorder %s192, %s206
      %p208 = scmp.eq.s32.totalorder %s30, 0
      %p209 = por %p207, %p208
      %s211 = sadd.s32 %s210, 1
      %p214 = scmp.eq.s32.totalorder %s24, 1
      %p215 = scmp.ne.s32.totalorder %s210, %s212
      %p216 = scmp.eq.s32.totalorder %s24, 0
      %p217 = por %p215, %p216
      %p218 = scmp.ne.s32.totalorder %s210, %s212
      %p219 = scmp.eq.s32.totalorder %s29, 1
      %p220 = por %p218, %p219
      %p221 = scmp.ne.s32.totalorder %s212, %s213
      %p222 = scmp.eq.s32.totalorder %s29, 0
      %p223 = por %p221, %p222
      %p224 = scmp.ne.s32.totalorder %s212, %s213
      %p225 = scmp.eq.s32.totalorder %s30, 1
      %p226 = por %p224, %p225
      %p228 = scmp.ne.s32.totalorder %s213, %s227
      %p229 = scmp.eq.s32.totalorder %s30, 0
      %p230 = por %p228, %p229
      %s232 = sadd.s32 %s231, 1
      %p235 = scmp.eq.s32.totalorder %s24, 1
      %p236 = scmp.ne.s32.totalorder %s231, %s233
      %p237 = scmp.eq.s32.totalorder %s24, 0
      %p238 = por %p236, %p237
      %p239 = scmp.ne.s32.totalorder %s231, %s233
      %p240 = scmp.eq.s32.totalorder %s29, 1
      %p241 = por %p239, %p240
      %p242 = scmp.ne.s32.totalorder %s233, %s234
      %p243 = scmp.eq.s32.totalorder %s29, 0
      %p244 = por %p242, %p243
      %p245 = scmp.ne.s32.totalorder %s233, %s234
      %p246 = scmp.eq.s32.totalorder %s30, 1
      %p247 = por %p245, %p246
      %p249 = scmp.ne.s32.totalorder %s234, %s248
      %p250 = scmp.eq.s32.totalorder %s30, 0
      %p251 = por %p249, %p250
      %s253 = sadd.s32 %s252, 1
      %p256 = scmp.eq.s32.totalorder %s24, 1
      %p257 = scmp.ne.s32.totalorder %s252, %s254
      %p258 = scmp.eq.s32.totalorder %s24, 0
      %p259 = por %p257, %p258
      %p260 = scmp.ne.s32.totalorder %s252, %s254
      %p261 = scmp.eq.s32.totalorder %s29, 1
      %p262 = por %p260, %p261
      %p263 = scmp.ne.s32.totalorder %s254, %s255
      %p264 = scmp.eq.s32.totalorder %s29, 0
      %p265 = por %p263, %p264
      %p266 = scmp.ne.s32.totalorder %s254, %s255
      %p267 = scmp.eq.s32.totalorder %s30, 1
      %p268 = por %p266, %p267
      %p270 = scmp.ne.s32.totalorder %s255, %s269
      %p271 = scmp.eq.s32.totalorder %s30, 0
      %p272 = por %p270, %p271
      %s274 = sadd.s32 %s273, 1
      %p277 = scmp.eq.s32.totalorder %s24, 1
      %p278 = scmp.ne.s32.totalorder %s273, %s275
      %p279 = scmp.eq.s32.totalorder %s24, 0
      %p280 = por %p278, %p279
      %p281 = scmp.ne.s32.totalorder %s273, %s275
      %p282 = scmp.eq.s32.totalorder %s29, 1
      %p283 = por %p281, %p282
      %p284 = scmp.ne.s32.totalorder %s275, %s276
      %p285 = scmp.eq.s32.totalorder %s29, 0
      %p286 = por %p284, %p285
      %p287 = scmp.ne.s32.totalorder %s275, %s276
      %p288 = scmp.eq.s32.totalorder %s30, 1
      %p289 = por %p287, %p288
      %p291 = scmp.ne.s32.totalorder %s276, %s290
      %p292 = scmp.eq.s32.totalorder %s30, 0
      %p293 = por %p291, %p292
      %s295 = sadd.s32 %s294, 1
      %p298 = scmp.eq.s32.totalorder %s24, 1
      %p299 = scmp.ne.s32.totalorder %s294, %s296
      %p300 = scmp.eq.s32.totalorder %s24, 0
      %p301 = por %p299, %p300
      %p302 = scmp.ne.s32.totalorder %s294, %s296
      %p303 = scmp.eq.s32.totalorder %s29, 1
      %p304 = por %p302, %p303
      %p305 = scmp.ne.s32.totalorder %s296, %s297
      %p306 = scmp.eq.s32.totalorder %s29, 0
      %p307 = por %p305, %p306
      %p308 = scmp.ne.s32.totalorder %s296, %s297
      %p309 = scmp.eq.s32.totalorder %s30, 1
      %p310 = por %p308, %p309
      %p312 = scmp.ne.s32.totalorder %s297, %s311
      %p313 = scmp.eq.s32.totalorder %s30, 0
      %p314 = por %p312, %p313
      %s315 = ssub.s32 %s24, %s31
      %p316 = scmp.eq.s32.totalorder %s315, 0
      %s318 = sadd.s32 %s317, 1
      %s319 = scalar_select %p316, %s317, %s318
      %p322 = pneg %p316
      %p323 = scmp.eq.s32.totalorder %s24, 1
      %p324 = por %p322, %p323
      %p325 = scmp.ne.s32.totalorder %s317, %s320
      %p326 = scmp.eq.s32.totalorder %s24, 0
      %p327 = por %p325, %p326
      %p328 = scmp.ne.s32.totalorder %s317, %s320
      %p329 = scmp.eq.s32.totalorder %s29, 1
      %p330 = por %p328, %p329
      %p331 = scmp.ne.s32.totalorder %s320, %s321
      %p332 = scmp.eq.s32.totalorder %s29, 0
      %p333 = por %p331, %p332
      %p334 = scmp.ne.s32.totalorder %s320, %s321
      %p335 = scmp.eq.s32.totalorder %s30, 1
      %p336 = por %p334, %p335
      %p338 = scmp.ne.s32.totalorder %s321, %s337
      %p339 = scmp.eq.s32.totalorder %s30, 0
      %p340 = por %p338, %p339
      %p341 = scmp.le.s32.totalorder 1, %s24
      %p342 = scmp.lt.s32.totalorder %s24, 3
      %p343 = pnand %p341, %p342
      %p344 = pneg %p343
      // Predicated region
      $region9: #{tpu_custom_call.1} parent=5 // pred_check
        _
      $region10: #{tpu_custom_call.1} parent=5 // pred_check_branch
        %346 = sbr.rel (%p343) target = $region12
      $region11: #{tpu_custom_call.1} parent=5 // pred_region
        %s347 = ssub.s32 %s24, 1
        // Predicated region
        $region13: #{tpu_custom_call.1} parent=11 // pred_check
          %p348 = pneg %p97
        $region14: #{tpu_custom_call.1} parent=11 // pred_check_branch
          %350 = sbr.rel (%p348) target = $region16
        $region15: #{tpu_custom_call.1} parent=11 // pred_region
          _
        $region16: #{tpu_custom_call.1} parent=11 // pred_fallthru
          _
        // Predicated region
        $region17: #{tpu_custom_call.1} parent=11 // pred_check
          %p351 = pneg %p118
        $region18: #{tpu_custom_call.1} parent=11 // pred_check_branch
          %353 = sbr.rel (%p351) target = $region20
        $region19: #{tpu_custom_call.1} parent=11 // pred_region
          _
        $region20: #{tpu_custom_call.1} parent=11 // pred_fallthru
          _
        // Predicated region
        $region21: #{tpu_custom_call.1} parent=11 // pred_check
          %p354 = pneg %p139
        $region22: #{tpu_custom_call.1} parent=11 // pred_check_branch
          %356 = sbr.rel (%p354) target = $region24
        $region23: #{tpu_custom_call.1} parent=11 // pred_region
          _
        $region24: #{tpu_custom_call.1} parent=11 // pred_fallthru
          _
        // Predicated region
        $region25: #{tpu_custom_call.1} parent=11 // pred_check
          %p357 = pneg %p160
        $region26: #{tpu_custom_call.1} parent=11 // pred_check_branch
          %359 = sbr.rel (%p357) target = $region28
        $region27: #{tpu_custom_call.1} parent=11 // pred_region
          _
        $region28: #{tpu_custom_call.1} parent=11 // pred_fallthru
          _
        // Predicated region
        $region29: #{tpu_custom_call.1} parent=11 // pred_check
          %p360 = pneg %p181
        $region30: #{tpu_custom_call.1} parent=11 // pred_check_branch
          %362 = sbr.rel (%p360) target = $region32
        $region31: #{tpu_custom_call.1} parent=11 // pred_region
          _
        $region32: #{tpu_custom_call.1} parent=11 // pred_fallthru
          _
        // Predicated region
        $region33: #{tpu_custom_call.1} parent=11 // pred_check
          %p363 = pneg %p202
        $region34: #{tpu_custom_call.1} parent=11 // pred_check_branch
          %365 = sbr.rel (%p363) target = $region36
        $region35: #{tpu_custom_call.1} parent=11 // pred_region
          _
        $region36: #{tpu_custom_call.1} parent=11 // pred_fallthru
          _
        // Predicated region
        $region37: #{tpu_custom_call.1} parent=11 // pred_check
          %p366 = pneg %p223
        $region38: #{tpu_custom_call.1} parent=11 // pred_check_branch
          %368 = sbr.rel (%p366) target = $region40
        $region39: #{tpu_custom_call.1} parent=11 // pred_region
          _
        $region40: #{tpu_custom_call.1} parent=11 // pred_fallthru
          _
        // Predicated region
        $region41: #{tpu_custom_call.1} parent=11 // pred_check
          %p369 = pneg %p244
        $region42: #{tpu_custom_call.1} parent=11 // pred_check_branch
          %371 = sbr.rel (%p369) target = $region44
        $region43: #{tpu_custom_call.1} parent=11 // pred_region
          _
        $region44: #{tpu_custom_call.1} parent=11 // pred_fallthru
          _
        // Predicated region
        $region45: #{tpu_custom_call.1} parent=11 // pred_check
          %p372 = pneg %p265
        $region46: #{tpu_custom_call.1} parent=11 // pred_check_branch
          %374 = sbr.rel (%p372) target = $region48
        $region47: #{tpu_custom_call.1} parent=11 // pred_region
          _
        $region48: #{tpu_custom_call.1} parent=11 // pred_fallthru
          _
        // Predicated region
        $region49: #{tpu_custom_call.1} parent=11 // pred_check
          %p375 = pneg %p286
        $region50: #{tpu_custom_call.1} parent=11 // pred_check_branch
          %377 = sbr.rel (%p375) target = $region52
        $region51: #{tpu_custom_call.1} parent=11 // pred_region
          _
        $region52: #{tpu_custom_call.1} parent=11 // pred_fallthru
          _
        // Predicated region
        $region53: #{tpu_custom_call.1} parent=11 // pred_check
          %p378 = pneg %p307
        $region54: #{tpu_custom_call.1} parent=11 // pred_check_branch
          %380 = sbr.rel (%p378) target = $region56
        $region55: #{tpu_custom_call.1} parent=11 // pred_region
          _
        $region56: #{tpu_custom_call.1} parent=11 // pred_fallthru
          _
      $region12: #{tpu_custom_call.1} parent=5 // pred_fallthru
        _
      %p381 = scmp.lt.s32.totalorder %s24, 2
      // Predicated region
      $region57: #{tpu_custom_call.1} parent=5 // pred_check
        %p382 = pneg %p381
      $region58: #{tpu_custom_call.1} parent=5 // pred_check_branch
        %384 = sbr.rel (%p382) target = $region60
      $region59: #{tpu_custom_call.1} parent=5 // pred_region
        // Predicated region
        $region61: #{tpu_custom_call.1} parent=59 // pred_check
          %p385 = pneg %p44
        $region62: #{tpu_custom_call.1} parent=59 // pred_check_branch
          %387 = sbr.rel (%p385) target = $region64
        $region63: #{tpu_custom_call.1} parent=59 // pred_region
          %s388 = smul.u32 8, %s24
          %p389 = scmp.lt.s32.totalorder %s388, 15
          %s390 = scalar_select %p389, %s388, 15
          %s391 = smul.addr %s390, 6
          %s392 = smul.addr %s391, 4
          %s393 = scalar_lea.vmem %s0, %s392
          %s394 = smul.u32 8, %s24
        $region64: #{tpu_custom_call.1} parent=59 // pred_fallthru
          _
        // Predicated region
        $region65: #{tpu_custom_call.1} parent=59 // pred_check
          %p395 = pneg %p70
        $region66: #{tpu_custom_call.1} parent=59 // pred_check_branch
          %397 = sbr.rel (%p395) target = $region68
        $region67: #{tpu_custom_call.1} parent=59 // pred_region
          %p398 = scmp.lt.s32.totalorder %s24, 1
          %s399 = scalar_select %p398, %s24, 1
          %s400 = smul.addr %s399, 8
          %s401 = scalar_lea.vmem %s1, %s400
        $region68: #{tpu_custom_call.1} parent=59 // pred_fallthru
          _
      $region60: #{tpu_custom_call.1} parent=5 // pred_fallthru
        _
      %p402 = scmp.le.s32.totalorder 1, %s24
      %p403 = scmp.lt.s32.totalorder %s24, 3
      %p404 = pnand %p402, %p403
      %p405 = pneg %p404
      // Predicated region
      $region69: #{tpu_custom_call.1} parent=5 // pred_check
        _
      $region70: #{tpu_custom_call.1} parent=5 // pred_check_branch
        %407 = sbr.rel (%p404) target = $region72
      $region71: #{tpu_custom_call.1} parent=5 // pred_region
        %s408 = ssub.s32 %s24, 1
        %s409 = smul.u32 8, %s29
        %p410 = scmp.lt.s32.totalorder %s409, 15
        %s411 = scalar_select %p410, %s409, 15
        %s412 = smul.addr %s411, 6
        %s413 = smul.addr %s412, 4
        %s414 = scalar_lea.vmem %s0, %s413
        %p415 = pneg %p50
        %p416 = pneg %p47
        %p417 = scmp.lt.s32.totalorder %s29, 1
        %s418 = scalar_select %p417, %s29, 1
        %s419 = smul.addr %s418, 8
        %s420 = scalar_lea.vmem %s1, %s419
        %p421 = pneg %p76
        %p422 = pneg %p73
        %p423 = pneg %p97
        %p424 = pneg %p94
        %p425 = pneg %p118
        %p426 = pneg %p115
        %p427 = pneg %p139
        %p428 = pneg %p136
        %p429 = pneg %p160
        %p430 = pneg %p157
        %p431 = pneg %p181
        %p432 = pneg %p178
        %p433 = pneg %p202
        %p434 = pneg %p199
        %p435 = pneg %p223
        %p436 = pneg %p220
        %p437 = pneg %p244
        %p438 = pneg %p241
        %p439 = pneg %p265
        %p440 = pneg %p262
        %p441 = pneg %p286
        %p442 = pneg %p283
        %p443 = pneg %p307
        %p444 = pneg %p304
        %p445 = pneg %p333
        %p446 = pneg %p330
        %s447 = sand.u32 %s320, 1
        %s448 = scalar_lea.sflag [#allocation4], %s447
        %s449 = sand.u32 %s320, 1
        %s450 = smul.addr %s449, 8
        %s451 = scalar_lea.vmem [#allocation3], %s450
        %s452 = smul.u32 8, %s29
        %p453 = scmp.lt.s32.totalorder %s452, 15
        %s454 = scalar_select %p453, %s452, 15
        %s455 = smul.addr %s454, 6
        %s456 = smul.addr %s455, 4
        %s457 = scalar_lea.vmem %s0, %s456
        %s458 = smul.u32 8, %s29
        %p459 = scmp.lt.s32.totalorder %s29, 1
        %s460 = scalar_select %p459, %s29, 1
        %s461 = smul.addr %s460, 8
        %s462 = scalar_lea.vmem %s1, %s461
        %v464 = vld [vmem:[%s457] sm:$0xff]
        %v465 = vld [vmem:[%s457 + $0x8] sm:$0xff]
        %v466 = vld [vmem:[%s457 + $0x10] sm:$0xff]
        %v467 = vld [vmem:[%s457 + $0x18] sm:$0xff]
        %v468 = vld [vmem:[%s457 + $0x20] sm:$0xff]
        %v469 = vld [vmem:[%s457 + $0x28] sm:$0xff]
        %v470 = vld [vmem:[%s457 + $0x30] sm:$0xff]
        %v471 = vld [vmem:[%s457 + $0x38] sm:$0xff]
        %v472 = vld [vmem:[%s457 + $0x40] sm:$0xff]
        %v473 = vld [vmem:[%s457 + $0x48] sm:$0xff]
        %v474 = vld [vmem:[%s457 + $0x50] sm:$0xff]
        %v475 = vld [vmem:[%s457 + $0x58] sm:$0xff]
        %v476 = vld [vmem:[%s457 + $0x60] sm:$0xff]
        %v477 = vld [vmem:[%s457 + $0x68] sm:$0xff]
        %v478 = vld [vmem:[%s457 + $0x70] sm:$0xff]
        %v479 = vld [vmem:[%s457 + $0x78] sm:$0xff]
        %v480 = vld [vmem:[%s457 + $0x80] sm:$0xff]
        %v481 = vld [vmem:[%s457 + $0x88] sm:$0xff]
        %v482 = vld [vmem:[%s457 + $0x90] sm:$0xff]
        %v483 = vld [vmem:[%s457 + $0x98] sm:$0xff]
        %v484 = vld [vmem:[%s457 + $0xa0] sm:$0xff]
        %v485 = vld [vmem:[%s457 + $0xa8] sm:$0xff]
        %v486 = vld [vmem:[%s457 + $0xb0] sm:$0xff]
        %v487 = vld [vmem:[%s457 + $0xb8] sm:$0xff]
        %v488 = vld [vmem:[%s7] sm:$0xf]
        %v489 = vld [vmem:[%s7 + $0x4] sm:$0xf]
        %v490 = vld [vmem:[%s7 + $0x8] sm:$0xf]
        %v491 = vld [vmem:[%s7 + $0xc] sm:$0xf]
        %v492 = vld [vmem:[%s7 + $0x10] sm:$0xf]
        %v493 = vld [vmem:[%s7 + $0x14] sm:$0xf]
        %v494 = vld [vmem:[%s7 + $0x18] sm:$0xf]
        %v495 = vld [vmem:[%s7 + $0x1c] sm:$0xf]
        %v496 = vld [vmem:[%s7 + $0x20] sm:$0xf]
        %v497 = vld [vmem:[%s7 + $0x24] sm:$0xf]
        %v498 = vld [vmem:[%s7 + $0x28] sm:$0xf]
        %v499 = vld [vmem:[%s7 + $0x2c] sm:$0xf]
        %v500 = vld [vmem:[%s7 + $0x30] sm:$0xf]
        %v501 = vld [vmem:[%s7 + $0x34] sm:$0xf]
        %v502 = vld [vmem:[%s7 + $0x38] sm:$0xf]
        %v503 = vld [vmem:[%s7 + $0x3c] sm:$0xf]
        %v504 = vld [vmem:[%s7 + $0x40] sm:$0xf]
        %v505 = vld [vmem:[%s7 + $0x44] sm:$0xf]
        %v506 = vld [vmem:[%s7 + $0x48] sm:$0xf]
        %v507 = vld [vmem:[%s7 + $0x4c] sm:$0xf]
        %v508 = vld [vmem:[%s7 + $0x50] sm:$0xf]
        %v509 = vld [vmem:[%s7 + $0x54] sm:$0xf]
        %v510 = vld [vmem:[%s7 + $0x58] sm:$0xf]
        %v511 = vld [vmem:[%s7 + $0x5c] sm:$0xf]
        %v512 = vld [vmem:[%s7 + $0x60] sm:$0xf]
        %v513 = vld [vmem:[%s7 + $0x64] sm:$0xf]
        %v514 = vld [vmem:[%s7 + $0x68] sm:$0xf]
        %v515 = vld [vmem:[%s7 + $0x6c] sm:$0xf]
        %v516 = vld [vmem:[%s7 + $0x70] sm:$0xf]
        %v517 = vld [vmem:[%s7 + $0x74] sm:$0xf]
        %v518 = vld [vmem:[%s7 + $0x78] sm:$0xf]
        %v519 = vld [vmem:[%s7 + $0x7c] sm:$0xf]
        %v520 = vld [vmem:[%s7 + $0x80] sm:$0xf]
        %v521 = vld [vmem:[%s7 + $0x84] sm:$0xf]
        %v522 = vld [vmem:[%s7 + $0x88] sm:$0xf]
        %v523 = vld [vmem:[%s7 + $0x8c] sm:$0xf]
        %v524 = vld [vmem:[%s7 + $0x90] sm:$0xf]
        %v525 = vld [vmem:[%s7 + $0x94] sm:$0xf]
        %v526 = vld [vmem:[%s7 + $0x98] sm:$0xf]
        %v527 = vld [vmem:[%s7 + $0x9c] sm:$0xf]
        %v528 = vld [vmem:[%s7 + $0xa0] sm:$0xf]
        %v529 = vld [vmem:[%s7 + $0xa4] sm:$0xf]
        %v530 = vld [vmem:[%s7 + $0xa8] sm:$0xf]
        %v531 = vld [vmem:[%s7 + $0xac] sm:$0xf]
        %v532 = vld [vmem:[%s7 + $0xb0] sm:$0xf]
        %v533 = vld [vmem:[%s7 + $0xb4] sm:$0xf]
        %v534 = vld [vmem:[%s7 + $0xb8] sm:$0xf]
        %v535 = vld [vmem:[%s7 + $0xbc] sm:$0xf]
        %v536 = vld [vmem:[%s7 + $0xc0] sm:$0xf]
        %v537 = vld [vmem:[%s7 + $0xc4] sm:$0xf]
        %v538 = vld [vmem:[%s7 + $0xc8] sm:$0xf]
        %v539 = vld [vmem:[%s7 + $0xcc] sm:$0xf]
        %v540 = vld [vmem:[%s7 + $0xd0] sm:$0xf]
        %v541 = vld [vmem:[%s7 + $0xd4] sm:$0xf]
        %v542 = vld [vmem:[%s7 + $0xd8] sm:$0xf]
        %v543 = vld [vmem:[%s7 + $0xdc] sm:$0xf]
        %v544 = vld [vmem:[%s7 + $0xe0] sm:$0xf]
        %v545 = vld [vmem:[%s7 + $0xe4] sm:$0xf]
        %v546 = vld [vmem:[%s7 + $0xe8] sm:$0xf]
        %v547 = vld [vmem:[%s7 + $0xec] sm:$0xf]
        %v548 = vld [vmem:[%s7 + $0xf0] sm:$0xf]
        %v549 = vld [vmem:[%s7 + $0xf4] sm:$0xf]
        %v550 = vld [vmem:[%s7 + $0xf8] sm:$0xf]
        %v551 = vld [vmem:[%s7 + $0xfc] sm:$0xf]
        %v552 = vld [vmem:[%s7 + $0x100] sm:$0xf]
        %v553 = vld [vmem:[%s7 + $0x104] sm:$0xf]
        %v554 = vld [vmem:[%s7 + $0x108] sm:$0xf]
        %v555 = vld [vmem:[%s7 + $0x10c] sm:$0xf]
        %v556 = vld [vmem:[%s7 + $0x110] sm:$0xf]
        %v557 = vld [vmem:[%s7 + $0x114] sm:$0xf]
        %v558 = vld [vmem:[%s7 + $0x118] sm:$0xf]
        %v559 = vld [vmem:[%s7 + $0x11c] sm:$0xf]
        %v560 = vld [vmem:[%s7 + $0x120] sm:$0xf]
        %v561 = vld [vmem:[%s7 + $0x124] sm:$0xf]
        %v562 = vld [vmem:[%s7 + $0x128] sm:$0xf]
        %v563 = vld [vmem:[%s7 + $0x12c] sm:$0xf]
        %v564 = vld [vmem:[%s7 + $0x130] sm:$0xf]
        %v565 = vld [vmem:[%s7 + $0x134] sm:$0xf]
        %v566 = vld [vmem:[%s7 + $0x138] sm:$0xf]
        %v567 = vld [vmem:[%s7 + $0x13c] sm:$0xf]
        %v568 = vld [vmem:[%s7 + $0x140] sm:$0xf]
        %v569 = vld [vmem:[%s7 + $0x144] sm:$0xf]
        %v570 = vld [vmem:[%s7 + $0x148] sm:$0xf]
        %v571 = vld [vmem:[%s7 + $0x14c] sm:$0xf]
        %v572 = vld [vmem:[%s7 + $0x150] sm:$0xf]
        %v573 = vld [vmem:[%s7 + $0x154] sm:$0xf]
        %v574 = vld [vmem:[%s7 + $0x158] sm:$0xf]
        %v575 = vld [vmem:[%s7 + $0x15c] sm:$0xf]
        %v576 = vld [vmem:[%s7 + $0x160] sm:$0xf]
        %v577 = vld [vmem:[%s7 + $0x164] sm:$0xf]
        %v578 = vld [vmem:[%s7 + $0x168] sm:$0xf]
        %v579 = vld [vmem:[%s7 + $0x16c] sm:$0xf]
        %v580 = vld [vmem:[%s7 + $0x170] sm:$0xf]
        %v581 = vld [vmem:[%s7 + $0x174] sm:$0xf]
        %v582 = vld [vmem:[%s7 + $0x178] sm:$0xf]
        %v583 = vld [vmem:[%s7 + $0x17c] sm:$0xf]
        %v608 = vunpack.c.l.b16 %v464
        %v609 = vunpack.c.h.b16 %v464
        %v610 = vunpack.c.l.b16 %v465
        %v611 = vunpack.c.h.b16 %v465
        %v612 = vunpack.c.l.b16 %v466
        %v613 = vunpack.c.h.b16 %v466
        %v614 = vunpack.c.l.b16 %v467
        %v615 = vunpack.c.h.b16 %v467
        %v616 = vunpack.c.l.b16 %v468
        %v617 = vunpack.c.h.b16 %v468
        %v618 = vunpack.c.l.b16 %v469
        %v619 = vunpack.c.h.b16 %v469
        %v620 = vunpack.c.l.b16 %v470
        %v621 = vunpack.c.h.b16 %v470
        %v622 = vunpack.c.l.b16 %v471
        %v623 = vunpack.c.h.b16 %v471
        %v624 = vunpack.c.l.b16 %v472
        %v625 = vunpack.c.h.b16 %v472
        %v626 = vunpack.c.l.b16 %v473
        %v627 = vunpack.c.h.b16 %v473
        %v628 = vunpack.c.l.b16 %v474
        %v629 = vunpack.c.h.b16 %v474
        %v630 = vunpack.c.l.b16 %v475
        %v631 = vunpack.c.h.b16 %v475
        %v632 = vunpack.c.l.b16 %v476
        %v633 = vunpack.c.h.b16 %v476
        %v634 = vunpack.c.l.b16 %v477
        %v635 = vunpack.c.h.b16 %v477
        %v636 = vunpack.c.l.b16 %v478
        %v637 = vunpack.c.h.b16 %v478
        %v638 = vunpack.c.l.b16 %v479
        %v639 = vunpack.c.h.b16 %v479
        %v640 = vunpack.c.l.b16 %v480
        %v641 = vunpack.c.h.b16 %v480
        %v642 = vunpack.c.l.b16 %v481
        %v643 = vunpack.c.h.b16 %v481
        %v644 = vunpack.c.l.b16 %v482
        %v645 = vunpack.c.h.b16 %v482
        %v646 = vunpack.c.l.b16 %v483
        %v647 = vunpack.c.h.b16 %v483
        %v648 = vunpack.c.l.b16 %v484
        %v649 = vunpack.c.h.b16 %v484
        %v650 = vunpack.c.l.b16 %v485
        %v651 = vunpack.c.h.b16 %v485
        %v652 = vunpack.c.l.b16 %v486
        %v653 = vunpack.c.h.b16 %v486
        %v654 = vunpack.c.l.b16 %v487
        %v655 = vunpack.c.h.b16 %v487
        %v656 = vpack.c.b16 %v614, %v608
        %v657 = vpack.c.b16 %v615, %v609
        %v658 = vpack.c.b16 %v616, %v610
        %v659 = vpack.c.b16 %v617, %v611
        %v660 = vpack.c.b16 %v618, %v612
        %v661 = vpack.c.b16 %v619, %v613
        %v662 = vpack.c.b16 %v626, %v620
        %v663 = vpack.c.b16 %v627, %v621
        %v664 = vpack.c.b16 %v628, %v622
        %v665 = vpack.c.b16 %v629, %v623
        %v666 = vpack.c.b16 %v630, %v624
        %v667 = vpack.c.b16 %v631, %v625
        %v668 = vpack.c.b16 %v638, %v632
        %v669 = vpack.c.b16 %v639, %v633
        %v670 = vpack.c.b16 %v640, %v634
        %v671 = vpack.c.b16 %v641, %v635
        %v672 = vpack.c.b16 %v642, %v636
        %v673 = vpack.c.b16 %v643, %v637
        %v674 = vpack.c.b16 %v650, %v644
        %v675 = vpack.c.b16 %v651, %v645
        %v676 = vpack.c.b16 %v652, %v646
        %v677 = vpack.c.b16 %v653, %v647
        %v678 = vpack.c.b16 %v654, %v648
        %v679 = vpack.c.b16 %v655, %v649
        %v800 = vunpack.c.l.b16 %v488
        %v801 = vunpack.c.l.b16 %v489
        %v802 = vunpack.c.l.b16 %v490
        %v803 = vunpack.c.l.b16 %v491
        %v804 = vunpack.c.l.b16 %v492
        %v805 = vunpack.c.l.b16 %v493
        %v806 = vunpack.c.l.b16 %v494
        %v807 = vunpack.c.l.b16 %v495
        %v808 = vunpack.c.l.b16 %v496
        %v809 = vunpack.c.l.b16 %v497
        %v810 = vunpack.c.l.b16 %v498
        %v811 = vunpack.c.l.b16 %v499
        %v812 = vunpack.c.l.b16 %v500
        %v813 = vunpack.c.l.b16 %v501
        %v814 = vunpack.c.l.b16 %v502
        %v815 = vunpack.c.l.b16 %v503
        %v816 = vunpack.c.l.b16 %v504
        %v817 = vunpack.c.l.b16 %v505
        %v818 = vunpack.c.l.b16 %v506
        %v819 = vunpack.c.l.b16 %v507
        %v820 = vunpack.c.l.b16 %v508
        %v821 = vunpack.c.l.b16 %v509
        %v822 = vunpack.c.l.b16 %v510
        %v823 = vunpack.c.l.b16 %v511
        %v824 = vunpack.c.l.b16 %v512
        %v825 = vunpack.c.l.b16 %v513
        %v826 = vunpack.c.l.b16 %v514
        %v827 = vunpack.c.l.b16 %v515
        %v828 = vunpack.c.l.b16 %v516
        %v829 = vunpack.c.l.b16 %v517
        %v830 = vunpack.c.l.b16 %v518
        %v831 = vunpack.c.l.b16 %v519
        %v832 = vunpack.c.l.b16 %v520
        %v833 = vunpack.c.l.b16 %v521
        %v834 = vunpack.c.l.b16 %v522
        %v835 = vunpack.c.l.b16 %v523
        %v836 = vunpack.c.l.b16 %v524
        %v837 = vunpack.c.l.b16 %v525
        %v838 = vunpack.c.l.b16 %v526
        %v839 = vunpack.c.l.b16 %v527
        %v840 = vunpack.c.l.b16 %v528
        %v841 = vunpack.c.l.b16 %v529
        %v842 = vunpack.c.l.b16 %v530
        %v843 = vunpack.c.l.b16 %v531
        %v844 = vunpack.c.l.b16 %v532
        %v845 = vunpack.c.l.b16 %v533
        %v846 = vunpack.c.l.b16 %v534
        %v847 = vunpack.c.l.b16 %v535
        %v848 = vunpack.c.l.b16 %v536
        %v849 = vunpack.c.l.b16 %v537
        %v850 = vunpack.c.l.b16 %v538
        %v851 = vunpack.c.l.b16 %v539
        %v852 = vunpack.c.l.b16 %v540
        %v853 = vunpack.c.l.b16 %v541
        %v854 = vunpack.c.l.b16 %v542
        %v855 = vunpack.c.l.b16 %v543
        %v856 = vunpack.c.l.b16 %v544
        %v857 = vunpack.c.l.b16 %v545
        %v858 = vunpack.c.l.b16 %v546
        %v859 = vunpack.c.l.b16 %v547
        %v860 = vunpack.c.l.b16 %v548
        %v861 = vunpack.c.l.b16 %v549
        %v862 = vunpack.c.l.b16 %v550
        %v863 = vunpack.c.l.b16 %v551
        %v864 = vunpack.c.l.b16 %v552
        %v865 = vunpack.c.l.b16 %v553
        %v866 = vunpack.c.l.b16 %v554
        %v867 = vunpack.c.l.b16 %v555
        %v868 = vunpack.c.l.b16 %v556
        %v869 = vunpack.c.l.b16 %v557
        %v870 = vunpack.c.l.b16 %v558
        %v871 = vunpack.c.l.b16 %v559
        %v872 = vunpack.c.l.b16 %v560
        %v873 = vunpack.c.l.b16 %v561
        %v874 = vunpack.c.l.b16 %v562
        %v875 = vunpack.c.l.b16 %v563
        %v876 = vunpack.c.l.b16 %v564
        %v877 = vunpack.c.l.b16 %v565
        %v878 = vunpack.c.l.b16 %v566
        %v879 = vunpack.c.l.b16 %v567
        %v880 = vunpack.c.l.b16 %v568
        %v881 = vunpack.c.l.b16 %v569
        %v882 = vunpack.c.l.b16 %v570
        %v883 = vunpack.c.l.b16 %v571
        %v884 = vunpack.c.l.b16 %v572
        %v885 = vunpack.c.l.b16 %v573
        %v886 = vunpack.c.l.b16 %v574
        %v887 = vunpack.c.l.b16 %v575
        %v888 = vunpack.c.l.b16 %v576
        %v889 = vunpack.c.l.b16 %v577
        %v890 = vunpack.c.l.b16 %v578
        %v891 = vunpack.c.l.b16 %v579
        %v892 = vunpack.c.l.b16 %v580
        %v893 = vunpack.c.l.b16 %v581
        %v894 = vunpack.c.l.b16 %v582
        %v895 = vunpack.c.l.b16 %v583
        %v896 = vpack.c.b16 %v801, %v800
        %v897 = vpack.c.b16 %v803, %v802
        %v898 = vpack.c.b16 %v805, %v804
        %v899 = vpack.c.b16 %v807, %v806
        %v900 = vpack.c.b16 %v809, %v808
        %v901 = vpack.c.b16 %v811, %v810
        %v902 = vpack.c.b16 %v813, %v812
        %v903 = vpack.c.b16 %v815, %v814
        %v904 = vpack.c.b16 %v817, %v816
        %v905 = vpack.c.b16 %v819, %v818
        %v906 = vpack.c.b16 %v821, %v820
        %v907 = vpack.c.b16 %v823, %v822
        %v908 = vpack.c.b16 %v825, %v824
        %v909 = vpack.c.b16 %v827, %v826
        %v910 = vpack.c.b16 %v829, %v828
        %v911 = vpack.c.b16 %v831, %v830
        %v912 = vpack.c.b16 %v833, %v832
        %v913 = vpack.c.b16 %v835, %v834
        %v914 = vpack.c.b16 %v837, %v836
        %v915 = vpack.c.b16 %v839, %v838
        %v916 = vpack.c.b16 %v841, %v840
        %v917 = vpack.c.b16 %v843, %v842
        %v918 = vpack.c.b16 %v845, %v844
        %v919 = vpack.c.b16 %v847, %v846
        %v920 = vpack.c.b16 %v849, %v848
        %v921 = vpack.c.b16 %v851, %v850
        %v922 = vpack.c.b16 %v853, %v852
        %v923 = vpack.c.b16 %v855, %v854
        %v924 = vpack.c.b16 %v857, %v856
        %v925 = vpack.c.b16 %v859, %v858
        %v926 = vpack.c.b16 %v861, %v860
        %v927 = vpack.c.b16 %v863, %v862
        %v928 = vpack.c.b16 %v865, %v864
        %v929 = vpack.c.b16 %v867, %v866
        %v930 = vpack.c.b16 %v869, %v868
        %v931 = vpack.c.b16 %v871, %v870
        %v932 = vpack.c.b16 %v873, %v872
        %v933 = vpack.c.b16 %v875, %v874
        %v934 = vpack.c.b16 %v877, %v876
        %v935 = vpack.c.b16 %v879, %v878
        %v936 = vpack.c.b16 %v881, %v880
        %v937 = vpack.c.b16 %v883, %v882
        %v938 = vpack.c.b16 %v885, %v884
        %v939 = vpack.c.b16 %v887, %v886
        %v940 = vpack.c.b16 %v889, %v888
        %v941 = vpack.c.b16 %v891, %v890
        %v942 = vpack.c.b16 %v893, %v892
        %v943 = vpack.c.b16 %v895, %v894
        %992 = vmatprep.subr.bf16.mxu0 0
        %993 = vmatpush1.bf16.msra.mxu0 %v896
        %994 = vmatprep.subr.bf16.mxu0 0
        %995 = vmatpush1.bf16.msra.mxu0 %v897
        %996 = vmatprep.subr.bf16.mxu0 0
        %997 = vmatpush1.bf16.msra.mxu0 %v898
        %998 = vmatprep.subr.bf16.mxu0 0
        %999 = vmatpush1.bf16.msra.mxu0 %v899
        %1000 = vmatprep.subr.bf16.mxu0 0
        %1001 = vmatpush1.bf16.msra.mxu0 %v900
        %1002 = vmatprep.subr.bf16.mxu0 0
        %1003 = vmatpush1.bf16.msra.mxu0 %v901
        %1004 = vmatprep.subr.bf16.mxu0 0
        %1005 = vmatpush1.bf16.msra.mxu0 %v902
        %1006 = vmatprep.subr.bf16.mxu0 0
        %1007 = vmatpush1.bf16.msra.mxu0 %v903
        %1008 = vmatprep.subr.bf16.mxu0 0
        %1009 = vmatpush1.bf16.msra.mxu0 %v904
        %1010 = vmatprep.subr.bf16.mxu0 0
        %1011 = vmatpush1.bf16.msra.mxu0 %v905
        %1012 = vmatprep.subr.bf16.mxu0 0
        %1013 = vmatpush1.bf16.msra.mxu0 %v906
        %1014 = vmatprep.subr.bf16.mxu0 0
        %1015 = vmatpush1.bf16.msra.mxu0 %v907
        %1016 = vmatprep.subr.bf16.mxu0 0
        %1017 = vmatpush1.bf16.msra.mxu0 %v908
        %1018 = vmatprep.subr.bf16.mxu0 0
        %1019 = vmatpush1.bf16.msra.mxu0 %v909
        %1020 = vmatprep.subr.bf16.mxu0 0
        %1021 = vmatpush1.bf16.msra.mxu0 %v910
        %1022 = vmatprep.subr.bf16.mxu0 0
        %1023 = vmatpush1.bf16.msra.mxu0 %v911
        %1024 = vmatprep.mubr.bf16.mxu0 %v657
        %1025 = vmatmul.mubr.bf16.gmra.mrb[0].mxu0 %v656
        %v1026 = vpop.f32.mrb[0].mxu0
        %v1027 = vadd.f32 0.0, %v1026
        %v1028 = vpop.f32.mrb[0].mxu0
        %v1029 = vpop.f32.mrb[0].mxu0
        %v1030 = vadd.f32 0.0, %v1029
        %v1031 = vpop.f32.mrb[0].mxu0
        %1032 = vmatprep.mubr.bf16.mxu0 %v663
        %1033 = vmatmul.mubr.bf16.gmra.mrb[0].mxu0 %v662
        %v1034 = vpop.f32.mrb[0].mxu0
        %v1035 = vadd.f32 0.0, %v1034
        %v1036 = vpop.f32.mrb[0].mxu0
        %v1037 = vpop.f32.mrb[0].mxu0
        %v1038 = vadd.f32 0.0, %v1037
        %v1039 = vpop.f32.mrb[0].mxu0
        %1040 = vmatprep.mubr.bf16.mxu0 %v669
        %1041 = vmatmul.mubr.bf16.gmra.mrb[0].mxu0 %v668
        %v1042 = vpop.f32.mrb[0].mxu0
        %v1043 = vadd.f32 0.0, %v1042
        %v1044 = vpop.f32.mrb[0].mxu0
        %v1045 = vpop.f32.mrb[0].mxu0
        %v1046 = vadd.f32 0.0, %v1045
        %v1047 = vpop.f32.mrb[0].mxu0
        %1048 = vmatprep.mubr.bf16.mxu0 %v675
        %1049 = vmatmul.mubr.bf16.gmra.mrb[0].mxu0 %v674
        %v1050 = vpop.f32.mrb[0].mxu0
        %v1051 = vadd.f32 0.0, %v1050
        %v1052 = vpop.f32.mrb[0].mxu0
        %v1053 = vpop.f32.mrb[0].mxu0
        %v1054 = vadd.f32 0.0, %v1053
        %v1055 = vpop.f32.mrb[0].mxu0
        %1056 = vdwg.mxu0
        %1057 = vmatprep.subr.bf16.mxu0 0
        %1058 = vmatpush1.bf16.msra.mxu0 %v912
        %1059 = vmatprep.subr.bf16.mxu0 0
        %1060 = vmatpush1.bf16.msra.mxu0 %v913
        %1061 = vmatprep.subr.bf16.mxu0 0
        %1062 = vmatpush1.bf16.msra.mxu0 %v914
        %1063 = vmatprep.subr.bf16.mxu0 0
        %1064 = vmatpush1.bf16.msra.mxu0 %v915
        %1065 = vmatprep.subr.bf16.mxu0 0
        %1066 = vmatpush1.bf16.msra.mxu0 %v916
        %1067 = vmatprep.subr.bf16.mxu0 0
        %1068 = vmatpush1.bf16.msra.mxu0 %v917
        %1069 = vmatprep.subr.bf16.mxu0 0
        %1070 = vmatpush1.bf16.msra.mxu0 %v918
        %1071 = vmatprep.subr.bf16.mxu0 0
        %1072 = vmatpush1.bf16.msra.mxu0 %v919
        %1073 = vmatprep.subr.bf16.mxu0 0
        %1074 = vmatpush1.bf16.msra.mxu0 %v920
        %1075 = vmatprep.subr.bf16.mxu0 0
        %1076 = vmatpush1.bf16.msra.mxu0 %v921
        %1077 = vmatprep.subr.bf16.mxu0 0
        %1078 = vmatpush1.bf16.msra.mxu0 %v922
        %1079 = vmatprep.subr.bf16.mxu0 0
        %1080 = vmatpush1.bf16.msra.mxu0 %v923
        %1081 = vmatprep.subr.bf16.mxu0 0
        %1082 = vmatpush1.bf16.msra.mxu0 %v924
        %1083 = vmatprep.subr.bf16.mxu0 0
        %1084 = vmatpush1.bf16.msra.mxu0 %v925
        %1085 = vmatprep.subr.bf16.mxu0 0
        %1086 = vmatpush1.bf16.msra.mxu0 %v926
        %1087 = vmatprep.subr.bf16.mxu0 0
        %1088 = vmatpush1.bf16.msra.mxu0 %v927
        %1089 = vmatprep.mubr.bf16.mxu0 %v659
        %1090 = vmatmul.mubr.bf16.gmra.mrb[0].mxu0 %v658
        %v1091 = vpop.f32.mrb[0].mxu0
        %v1092 = vadd.f32 %v1027, %v1091
        %v1093 = vpop.f32.mrb[0].mxu0
        %v1094 = vpop.f32.mrb[0].mxu0
        %v1095 = vadd.f32 %v1030, %v1094
        %v1096 = vpop.f32.mrb[0].mxu0
        %1097 = vmatprep.mubr.bf16.mxu0 %v665
        %1098 = vmatmul.mubr.bf16.gmra.mrb[0].mxu0 %v664
        %v1099 = vpop.f32.mrb[0].mxu0
        %v1100 = vadd.f32 %v1035, %v1099
        %v1101 = vpop.f32.mrb[0].mxu0
        %v1102 = vpop.f32.mrb[0].mxu0
        %v1103 = vadd.f32 %v1038, %v1102
        %v1104 = vpop.f32.mrb[0].mxu0
        %1105 = vmatprep.mubr.bf16.mxu0 %v671
        %1106 = vmatmul.mubr.bf16.gmra.mrb[0].mxu0 %v670
        %v1107 = vpop.f32.mrb[0].mxu0
        %v1108 = vadd.f32 %v1043, %v1107
        %v1109 = vpop.f32.mrb[0].mxu0
        %v1110 = vpop.f32.mrb[0].mxu0
        %v1111 = vadd.f32 %v1046, %v1110
        %v1112 = vpop.f32.mrb[0].mxu0
        %1113 = vmatprep.mubr.bf16.mxu0 %v677
        %1114 = vmatmul.mubr.bf16.gmra.mrb[0].mxu0 %v676
        %v1115 = vpop.f32.mrb[0].mxu0
        %v1116 = vadd.f32 %v1051, %v1115
        %v1117 = vpop.f32.mrb[0].mxu0
        %v1118 = vpop.f32.mrb[0].mxu0
        %v1119 = vadd.f32 %v1054, %v1118
        %v1120 = vpop.f32.mrb[0].mxu0
        %1121 = vdwg.mxu0
        %1122 = vmatprep.subr.bf16.mxu0 0
        %1123 = vmatpush1.bf16.msra.mxu0 %v928
        %1124 = vmatprep.subr.bf16.mxu0 0
        %1125 = vmatpush1.bf16.msra.mxu0 %v929
        %1126 = vmatprep.subr.bf16.mxu0 0
        %1127 = vmatpush1.bf16.msra.mxu0 %v930
        %1128 = vmatprep.subr.bf16.mxu0 0
        %1129 = vmatpush1.bf16.msra.mxu0 %v931
        %1130 = vmatprep.subr.bf16.mxu0 0
        %1131 = vmatpush1.bf16.msra.mxu0 %v932
        %1132 = vmatprep.subr.bf16.mxu0 0
        %1133 = vmatpush1.bf16.msra.mxu0 %v933
        %1134 = vmatprep.subr.bf16.mxu0 0
        %1135 = vmatpush1.bf16.msra.mxu0 %v934
        %1136 = vmatprep.subr.bf16.mxu0 0
        %1137 = vmatpush1.bf16.msra.mxu0 %v935
        %1138 = vmatprep.subr.bf16.mxu0 0
        %1139 = vmatpush1.bf16.msra.mxu0 %v936
        %1140 = vmatprep.subr.bf16.mxu0 0
        %1141 = vmatpush1.bf16.msra.mxu0 %v937
        %1142 = vmatprep.subr.bf16.mxu0 0
        %1143 = vmatpush1.bf16.msra.mxu0 %v938
        %1144 = vmatprep.subr.bf16.mxu0 0
        %1145 = vmatpush1.bf16.msra.mxu0 %v939
        %1146 = vmatprep.subr.bf16.mxu0 0
        %1147 = vmatpush1.bf16.msra.mxu0 %v940
        %1148 = vmatprep.subr.bf16.mxu0 0
        %1149 = vmatpush1.bf16.msra.mxu0 %v941
        %1150 = vmatprep.subr.bf16.mxu0 0
        %1151 = vmatpush1.bf16.msra.mxu0 %v942
        %1152 = vmatprep.subr.bf16.mxu0 0
        %1153 = vmatpush1.bf16.msra.mxu0 %v943
        %1154 = vmatprep.mubr.bf16.mxu0 %v661
        %1155 = vmatmul.mubr.bf16.gmra.mrb[0].mxu0 %v660
        %v1156 = vpop.f32.mrb[0].mxu0
        %v1157 = vadd.f32 %v1092, %v1156
        %v1158 = vpop.f32.mrb[0].mxu0
        %v1159 = vpop.f32.mrb[0].mxu0
        %v1160 = vadd.f32 %v1095, %v1159
        %v1161 = vpop.f32.mrb[0].mxu0
        %1162 = vmatprep.mubr.bf16.mxu0 %v667
        %1163 = vmatmul.mubr.bf16.gmra.mrb[0].mxu0 %v666
        %v1164 = vpop.f32.mrb[0].mxu0
        %v1165 = vadd.f32 %v1100, %v1164
        %v1166 = vpop.f32.mrb[0].mxu0
        %v1167 = vpop.f32.mrb[0].mxu0
        %v1168 = vadd.f32 %v1103, %v1167
        %v1169 = vpop.f32.mrb[0].mxu0
        %1170 = vmatprep.mubr.bf16.mxu0 %v673
        %1171 = vmatmul.mubr.bf16.gmra.mrb[0].mxu0 %v672
        %v1172 = vpop.f32.mrb[0].mxu0
        %v1173 = vadd.f32 %v1108, %v1172
        %v1174 = vpop.f32.mrb[0].mxu0
        %v1175 = vpop.f32.mrb[0].mxu0
        %v1176 = vadd.f32 %v1111, %v1175
        %v1177 = vpop.f32.mrb[0].mxu0
        %1178 = vmatprep.mubr.bf16.mxu0 %v679
        %1179 = vmatmul.mubr.bf16.gmra.mrb[0].mxu0 %v678
        %v1180 = vpop.f32.mrb[0].mxu0
        %v1181 = vadd.f32 %v1116, %v1180
        %v1182 = vpop.f32.mrb[0].mxu0
        %v1183 = vpop.f32.mrb[0].mxu0
        %v1184 = vadd.f32 %v1119, %v1183
        %v1185 = vpop.f32.mrb[0].mxu0
        %1186 = vdwg.mxu0
        %vm1187 = vcmask 523264
        %v1188 = vsel %vm1187, %v1157, 0.0
        %v1189 = vrot.slane %v1188, 4
        %v1190 = vadd.f32 %v1188, %v1189
        %v1191 = vrot.slane %v1190, 2
        %v1192 = vadd.f32 %v1190, %v1191
        %v1193 = vrot.slane %v1192, 1
        %v1194 = vadd.f32 %v1192, %v1193
        %v1195 = vsel %vm1187, %v1160, 0.0
        %v1196 = vrot.slane %v1195, 4
        %v1197 = vadd.f32 %v1195, %v1196
        %v1198 = vrot.slane %v1197, 2
        %v1199 = vadd.f32 %v1197, %v1198
        %v1200 = vrot.slane %v1199, 1
        %v1201 = vadd.f32 %v1199, %v1200
        %v1202 = vsel %vm1187, %v1165, 0.0
        %v1203 = vrot.slane %v1202, 4
        %v1204 = vadd.f32 %v1202, %v1203
        %v1205 = vrot.slane %v1204, 2
        %v1206 = vadd.f32 %v1204, %v1205
        %v1207 = vrot.slane %v1206, 1
        %v1208 = vadd.f32 %v1206, %v1207
        %v1209 = vsel %vm1187, %v1168, 0.0
        %v1210 = vrot.slane %v1209, 4
        %v1211 = vadd.f32 %v1209, %v1210
        %v1212 = vrot.slane %v1211, 2
        %v1213 = vadd.f32 %v1211, %v1212
        %v1214 = vrot.slane %v1213, 1
        %v1215 = vadd.f32 %v1213, %v1214
        %v1216 = vsel %vm1187, %v1173, 0.0
        %v1217 = vrot.slane %v1216, 4
        %v1218 = vadd.f32 %v1216, %v1217
        %v1219 = vrot.slane %v1218, 2
        %v1220 = vadd.f32 %v1218, %v1219
        %v1221 = vrot.slane %v1220, 1
        %v1222 = vadd.f32 %v1220, %v1221
        %v1223 = vsel %vm1187, %v1176, 0.0
        %v1224 = vrot.slane %v1223, 4
        %v1225 = vadd.f32 %v1223, %v1224
        %v1226 = vrot.slane %v1225, 2
        %v1227 = vadd.f32 %v1225, %v1226
        %v1228 = vrot.slane %v1227, 1
        %v1229 = vadd.f32 %v1227, %v1228
        %v1230 = vsel %vm1187, %v1181, 0.0
        %v1231 = vrot.slane %v1230, 4
        %v1232 = vadd.f32 %v1230, %v1231
        %v1233 = vrot.slane %v1232, 2
        %v1234 = vadd.f32 %v1232, %v1233
        %v1235 = vrot.slane %v1234, 1
        %v1236 = vadd.f32 %v1234, %v1235
        %v1237 = vsel %vm1187, %v1184, 0.0
        %v1238 = vrot.slane %v1237, 4
        %v1239 = vadd.f32 %v1237, %v1238
        %v1240 = vrot.slane %v1239, 2
        %v1241 = vadd.f32 %v1239, %v1240
        %v1242 = vrot.slane %v1241, 1
        %v1243 = vadd.f32 %v1241, %v1242
        %v1244 = vld [vmem:[%s462] sm:$0xff]
        %v1245 = vld [vmem:[%s2] sm:$0xff]
        %v1246 = vld [vmem:[%s2 + $0x8] sm:$0xff]
        %v1247 = vld [vmem:[%s2 + $0x10] sm:$0xff]
        %v1248 = vld [vmem:[%s2 + $0x18] sm:$0xff]
        %v1249 = vld [vmem:[%s3] sm:$0x1]
        %v1251 = vlaneseq
        %v1252 = vshrl.u32 %v1251, 7
        %v1253 = vsub.s32 0, %v1252
        %v1254 = vrot.slane %v1249, %v1253
        %vm1256 = vcmask 261120
        %v1258 = vsel %vm1256, %v1244, 0
        %1260 = vmatprep.subr.mxu0 0.0
        %1261 = vmatpush1.msra.mxu0 %v1245
        %1262 = vmatprep.subr.mxu0 0.0
        %1263 = vmatpush1.msra.mxu0 %v1246
        %1264 = vmatprep.subr.mxu0 0.0
        %1265 = vmatpush1.msra.mxu0 %v1247
        %1266 = vmatprep.subr.mxu0 0.0
        %1267 = vmatpush1.msra.mxu0 %v1248
        %1268 = vmatprep.subr.mxu0 0.0
        %1269 = vmatpush1.msra.mxu0 0.0
        %1270 = vmatprep.subr.mxu0 0.0
        %1271 = vmatpush1.msra.mxu0 0.0
        %1272 = vmatprep.subr.mxu0 0.0
        %1273 = vmatpush1.msra.mxu0 0.0
        %1274 = vmatprep.subr.mxu0 0.0
        %1275 = vmatpush1.msra.mxu0 0.0
        %1276 = vmatprep.subr.mxu0 0.0
        %1277 = vmatpush1.msra.mxu0 0.0
        %1278 = vmatprep.subr.mxu0 0.0
        %1279 = vmatpush1.msra.mxu0 0.0
        %1280 = vmatprep.subr.mxu0 0.0
        %1281 = vmatpush1.msra.mxu0 0.0
        %1282 = vmatprep.subr.mxu0 0.0
        %1283 = vmatpush1.msra.mxu0 0.0
        %1284 = vmatprep.subr.mxu0 0.0
        %1285 = vmatpush1.msra.mxu0 0.0
        %1286 = vmatprep.subr.mxu0 0.0
        %1287 = vmatpush1.msra.mxu0 0.0
        %1288 = vmatprep.subr.mxu0 0.0
        %1289 = vmatpush1.msra.mxu0 0.0
        %1290 = vmatprep.subr.mxu0 0.0
        %1291 = vmatpush1.msra.mxu0 0.0
        %1292 = vmatprep.subr.mxu0 0.0
        %1293 = vmatpush1.msra.mxu0 0.0
        %1294 = vmatprep.subr.mxu0 0.0
        %1295 = vmatpush1.msra.mxu0 0.0
        %1296 = vmatprep.subr.mxu0 0.0
        %1297 = vmatpush1.msra.mxu0 0.0
        %1298 = vmatprep.subr.mxu0 0.0
        %1299 = vmatpush1.msra.mxu0 0.0
        %1300 = vmatprep.subr.mxu0 0.0
        %1301 = vmatpush1.msra.mxu0 0.0
        %1302 = vmatprep.subr.mxu0 0.0
        %1303 = vmatpush1.msra.mxu0 0.0
        %1304 = vmatprep.subr.mxu0 0.0
        %1305 = vmatpush1.msra.mxu0 0.0
        %1306 = vmatprep.subr.mxu0 0.0
        %1307 = vmatpush1.msra.mxu0 0.0
        %1308 = vmatprep.subr.mxu0 0.0
        %1309 = vmatpush1.msra.mxu0 0.0
        %1310 = vmatprep.subr.mxu0 0.0
        %1311 = vmatpush1.msra.mxu0 0.0
        %1312 = vmatprep.subr.mxu0 0.0
        %1313 = vmatpush1.msra.mxu0 0.0
        %1314 = vmatprep.subr.mxu0 0.0
        %1315 = vmatpush1.msra.mxu0 0.0
        %1316 = vmatprep.subr.mxu0 0.0
        %1317 = vmatpush1.msra.mxu0 0.0
        %1318 = vmatprep.subr.mxu0 0.0
        %1319 = vmatpush1.msra.mxu0 0.0
        %1320 = vmatprep.subr.mxu0 0.0
        %1321 = vmatpush1.msra.mxu0 0.0
        %1322 = vmatprep.subr.mxu0 0.0
        %1323 = vmatpush1.msra.mxu0 0.0
        %1324 = vmatprep.mubr.f32.mxu0 0.0
        %1325 = vmatmul.mubr.f32.gmra.mrb[0].mxu0 %v1258
        %v1326 = vpop.f32.mrb[0].mxu0
        %v1327 = vadd.f32 %v1254, %v1326
        %v1328 = vpop.f32.mrb[0].mxu0
        %1329 = vdwg.mxu0
        %v1330 = vmax.f32 %v1327, 0.0
        %v1331 = vld [vmem:[%s4] sm:$0xff]
        %v1332 = vld [vmem:[%s4 + $0x8] sm:$0xff]
        %v1333 = vld [vmem:[%s4 + $0x10] sm:$0xff]
        %v1334 = vld [vmem:[%s4 + $0x18] sm:$0xff]
        %v1335 = vld [vmem:[%s4 + $0x20] sm:$0xff]
        %v1336 = vld [vmem:[%s4 + $0x28] sm:$0xff]
        %v1337 = vld [vmem:[%s4 + $0x30] sm:$0xff]
        %v1338 = vld [vmem:[%s4 + $0x38] sm:$0xff]
        %v1339 = vld [vmem:[%s5] sm:$0x1]
        %v1341 = vlaneseq
        %v1342 = vshrl.u32 %v1341, 7
        %v1343 = vsub.s32 0, %v1342
        %v1344 = vrot.slane %v1339, %v1343
        %v1347 = vsel %vm1187, %v1330, 0
        %1349 = vmatprep.subr.mxu0 0.0
        %1350 = vmatpush1.msra.mxu0 %v1331
        %1351 = vmatprep.subr.mxu0 0.0
        %1352 = vmatpush1.msra.mxu0 %v1332
        %1353 = vmatprep.subr.mxu0 0.0
        %1354 = vmatpush1.msra.mxu0 %v1333
        %1355 = vmatprep.subr.mxu0 0.0
        %1356 = vmatpush1.msra.mxu0 %v1334
        %1357 = vmatprep.subr.mxu0 0.0
        %1358 = vmatpush1.msra.mxu0 %v1335
        %1359 = vmatprep.subr.mxu0 0.0
        %1360 = vmatpush1.msra.mxu0 %v1336
        %1361 = vmatprep.subr.mxu0 0.0
        %1362 = vmatpush1.msra.mxu0 %v1337
        %1363 = vmatprep.subr.mxu0 0.0
        %1364 = vmatpush1.msra.mxu0 %v1338
        %1365 = vmatprep.subr.mxu0 0.0
        %1366 = vmatpush1.msra.mxu0 0.0
        %1367 = vmatprep.subr.mxu0 0.0
        %1368 = vmatpush1.msra.mxu0 0.0
        %1369 = vmatprep.subr.mxu0 0.0
        %1370 = vmatpush1.msra.mxu0 0.0
        %1371 = vmatprep.subr.mxu0 0.0
        %1372 = vmatpush1.msra.mxu0 0.0
        %1373 = vmatprep.subr.mxu0 0.0
        %1374 = vmatpush1.msra.mxu0 0.0
        %1375 = vmatprep.subr.mxu0 0.0
        %1376 = vmatpush1.msra.mxu0 0.0
        %1377 = vmatprep.subr.mxu0 0.0
        %1378 = vmatpush1.msra.mxu0 0.0
        %1379 = vmatprep.subr.mxu0 0.0
        %1380 = vmatpush1.msra.mxu0 0.0
        %1381 = vmatprep.subr.mxu0 0.0
        %1382 = vmatpush1.msra.mxu0 0.0
        %1383 = vmatprep.subr.mxu0 0.0
        %1384 = vmatpush1.msra.mxu0 0.0
        %1385 = vmatprep.subr.mxu0 0.0
        %1386 = vmatpush1.msra.mxu0 0.0
        %1387 = vmatprep.subr.mxu0 0.0
        %1388 = vmatpush1.msra.mxu0 0.0
        %1389 = vmatprep.subr.mxu0 0.0
        %1390 = vmatpush1.msra.mxu0 0.0
        %1391 = vmatprep.subr.mxu0 0.0
        %1392 = vmatpush1.msra.mxu0 0.0
        %1393 = vmatprep.subr.mxu0 0.0
        %1394 = vmatpush1.msra.mxu0 0.0
        %1395 = vmatprep.subr.mxu0 0.0
        %1396 = vmatpush1.msra.mxu0 0.0
        %1397 = vmatprep.subr.mxu0 0.0
        %1398 = vmatpush1.msra.mxu0 0.0
        %1399 = vmatprep.subr.mxu0 0.0
        %1400 = vmatpush1.msra.mxu0 0.0
        %1401 = vmatprep.subr.mxu0 0.0
        %1402 = vmatpush1.msra.mxu0 0.0
        %1403 = vmatprep.subr.mxu0 0.0
        %1404 = vmatpush1.msra.mxu0 0.0
        %1405 = vmatprep.subr.mxu0 0.0
        %1406 = vmatpush1.msra.mxu0 0.0
        %1407 = vmatprep.subr.mxu0 0.0
        %1408 = vmatpush1.msra.mxu0 0.0
        %1409 = vmatprep.subr.mxu0 0.0
        %1410 = vmatpush1.msra.mxu0 0.0
        %1411 = vmatprep.subr.mxu0 0.0
        %1412 = vmatpush1.msra.mxu0 0.0
        %1413 = vmatprep.mubr.f32.mxu0 0.0
        %1414 = vmatmul.mubr.f32.gmra.mrb[0].mxu0 %v1347
        %v1415 = vpop.f32.mrb[0].mxu0
        %v1416 = vadd.f32 %v1344, %v1415
        %v1417 = vpop.f32.mrb[0].mxu0
        %1418 = vdwg.mxu0
        %v1419 = vmax.f32 %v1416, 0.0
        %v1420 = vld [vmem:[%s6] sm:$0xff]
        %v1421 = vld [vmem:[%s6 + $0x8] sm:$0xff]
        %v1422 = vld [vmem:[%s6 + $0x10] sm:$0xff]
        %v1423 = vld [vmem:[%s6 + $0x18] sm:$0xff]
        %vm1432 = vcmask 1041409
        %v1433 = vsel %vm1432, %v1201, %v1194
        %vm1434 = vcmask 1042434
        %v1435 = vsel %vm1434, %v1208, %v1433
        %vm1436 = vcmask 1043459
        %v1437 = vsel %vm1436, %v1215, %v1435
        %vm1438 = vcmask 1044484
        %v1439 = vsel %vm1438, %v1222, %v1437
        %vm1440 = vcmask 1045509
        %v1441 = vsel %vm1440, %v1229, %v1439
        %vm1442 = vcmask 1046534
        %v1443 = vsel %vm1442, %v1236, %v1441
        %vm1444 = vcmask 1047559
        %v1445 = vsel %vm1444, %v1243, %v1443
        %v1448 = vsel %vm1256, %v1419, 0
        %1450 = vmatprep.subr.mxu0 0.0
        %1451 = vmatpush1.msra.mxu0 %v1420
        %1452 = vmatprep.subr.mxu0 0.0
        %1453 = vmatpush1.msra.mxu0 %v1421
        %1454 = vmatprep.subr.mxu0 0.0
        %1455 = vmatpush1.msra.mxu0 %v1422
        %1456 = vmatprep.subr.mxu0 0.0
        %1457 = vmatpush1.msra.mxu0 %v1423
        %1458 = vmatprep.subr.mxu0 0.0
        %1459 = vmatpush1.msra.mxu0 0.0
        %1460 = vmatprep.subr.mxu0 0.0
        %1461 = vmatpush1.msra.mxu0 0.0
        %1462 = vmatprep.subr.mxu0 0.0
        %1463 = vmatpush1.msra.mxu0 0.0
        %1464 = vmatprep.subr.mxu0 0.0
        %1465 = vmatpush1.msra.mxu0 0.0
        %1466 = vmatprep.subr.mxu0 0.0
        %1467 = vmatpush1.msra.mxu0 0.0
        %1468 = vmatprep.subr.mxu0 0.0
        %1469 = vmatpush1.msra.mxu0 0.0
        %1470 = vmatprep.subr.mxu0 0.0
        %1471 = vmatpush1.msra.mxu0 0.0
        %1472 = vmatprep.subr.mxu0 0.0
        %1473 = vmatpush1.msra.mxu0 0.0
        %1474 = vmatprep.subr.mxu0 0.0
        %1475 = vmatpush1.msra.mxu0 0.0
        %1476 = vmatprep.subr.mxu0 0.0
        %1477 = vmatpush1.msra.mxu0 0.0
        %1478 = vmatprep.subr.mxu0 0.0
        %1479 = vmatpush1.msra.mxu0 0.0
        %1480 = vmatprep.subr.mxu0 0.0
        %1481 = vmatpush1.msra.mxu0 0.0
        %1482 = vmatprep.subr.mxu0 0.0
        %1483 = vmatpush1.msra.mxu0 0.0
        %1484 = vmatprep.subr.mxu0 0.0
        %1485 = vmatpush1.msra.mxu0 0.0
        %1486 = vmatprep.subr.mxu0 0.0
        %1487 = vmatpush1.msra.mxu0 0.0
        %1488 = vmatprep.subr.mxu0 0.0
        %1489 = vmatpush1.msra.mxu0 0.0
        %1490 = vmatprep.subr.mxu0 0.0
        %1491 = vmatpush1.msra.mxu0 0.0
        %1492 = vmatprep.subr.mxu0 0.0
        %1493 = vmatpush1.msra.mxu0 0.0
        %1494 = vmatprep.subr.mxu0 0.0
        %1495 = vmatpush1.msra.mxu0 0.0
        %1496 = vmatprep.subr.mxu0 0.0
        %1497 = vmatpush1.msra.mxu0 0.0
        %1498 = vmatprep.subr.mxu0 0.0
        %1499 = vmatpush1.msra.mxu0 0.0
        %1500 = vmatprep.subr.mxu0 0.0
        %1501 = vmatpush1.msra.mxu0 0.0
        %1502 = vmatprep.subr.mxu0 0.0
        %1503 = vmatpush1.msra.mxu0 0.0
        %1504 = vmatprep.subr.mxu0 0.0
        %1505 = vmatpush1.msra.mxu0 0.0
        %1506 = vmatprep.subr.mxu0 0.0
        %1507 = vmatpush1.msra.mxu0 0.0
        %1508 = vmatprep.subr.mxu0 0.0
        %1509 = vmatpush1.msra.mxu0 0.0
        %1510 = vmatprep.subr.mxu0 0.0
        %1511 = vmatpush1.msra.mxu0 0.0
        %1512 = vmatprep.subr.mxu0 0.0
        %1513 = vmatpush1.msra.mxu0 0.0
        %1514 = vmatprep.mubr.f32.mxu0 0.0
        %1515 = vmatmul.mubr.f32.gmra.mrb[0].mxu0 %v1448
        %v1516 = vpop.f32.mrb[0].mxu0
        %v1517 = vadd.f32 %v1445, %v1516
        %v1518 = vpop.f32.mrb[0].mxu0
        %1519 = vdwg.mxu0
        %v1520 = vld [vmem:[%s8] sm:$0x1]
        %v1522 = vlaneseq
        %v1523 = vshrl.u32 %v1522, 7
        %v1524 = vsub.s32 0, %v1523
        %v1525 = vrot.slane %v1520, %v1524
        %v1527 = vadd.f32 %v1517, %v1525
        %v1528 = vmax.f32 %v1527, 0.0
        %v1529 = vld [vmem:[%s9] sm:$0xff]
        %v1530 = vld [vmem:[%s9 + $0x8] sm:$0xff]
        %v1531 = vld [vmem:[%s9 + $0x10] sm:$0xff]
        %v1532 = vld [vmem:[%s9 + $0x18] sm:$0xff]
        %v1533 = vld [vmem:[%s9 + $0x20] sm:$0xff]
        %v1534 = vld [vmem:[%s9 + $0x28] sm:$0xff]
        %v1535 = vld [vmem:[%s9 + $0x30] sm:$0xff]
        %v1536 = vld [vmem:[%s9 + $0x38] sm:$0xff]
        %v1537 = vld [vmem:[%s10] sm:$0x1]
        %v1539 = vlaneseq
        %v1540 = vshrl.u32 %v1539, 7
        %v1541 = vsub.s32 0, %v1540
        %v1542 = vrot.slane %v1537, %v1541
        %v1545 = vsel %vm1187, %v1528, 0
        %1547 = vmatprep.subr.mxu0 0.0
        %1548 = vmatpush1.msra.mxu0 %v1529
        %1549 = vmatprep.subr.mxu0 0.0
        %1550 = vmatpush1.msra.mxu0 %v1530
        %1551 = vmatprep.subr.mxu0 0.0
        %1552 = vmatpush1.msra.mxu0 %v1531
        %1553 = vmatprep.subr.mxu0 0.0
        %1554 = vmatpush1.msra.mxu0 %v1532
        %1555 = vmatprep.subr.mxu0 0.0
        %1556 = vmatpush1.msra.mxu0 %v1533
        %1557 = vmatprep.subr.mxu0 0.0
        %1558 = vmatpush1.msra.mxu0 %v1534
        %1559 = vmatprep.subr.mxu0 0.0
        %1560 = vmatpush1.msra.mxu0 %v1535
        %1561 = vmatprep.subr.mxu0 0.0
        %1562 = vmatpush1.msra.mxu0 %v1536
        %1563 = vmatprep.subr.mxu0 0.0
        %1564 = vmatpush1.msra.mxu0 0.0
        %1565 = vmatprep.subr.mxu0 0.0
        %1566 = vmatpush1.msra.mxu0 0.0
        %1567 = vmatprep.subr.mxu0 0.0
        %1568 = vmatpush1.msra.mxu0 0.0
        %1569 = vmatprep.subr.mxu0 0.0
        %1570 = vmatpush1.msra.mxu0 0.0
        %1571 = vmatprep.subr.mxu0 0.0
        %1572 = vmatpush1.msra.mxu0 0.0
        %1573 = vmatprep.subr.mxu0 0.0
        %1574 = vmatpush1.msra.mxu0 0.0
        %1575 = vmatprep.subr.mxu0 0.0
        %1576 = vmatpush1.msra.mxu0 0.0
        %1577 = vmatprep.subr.mxu0 0.0
        %1578 = vmatpush1.msra.mxu0 0.0
        %1579 = vmatprep.subr.mxu0 0.0
        %1580 = vmatpush1.msra.mxu0 0.0
        %1581 = vmatprep.subr.mxu0 0.0
        %1582 = vmatpush1.msra.mxu0 0.0
        %1583 = vmatprep.subr.mxu0 0.0
        %1584 = vmatpush1.msra.mxu0 0.0
        %1585 = vmatprep.subr.mxu0 0.0
        %1586 = vmatpush1.msra.mxu0 0.0
        %1587 = vmatprep.subr.mxu0 0.0
        %1588 = vmatpush1.msra.mxu0 0.0
        %1589 = vmatprep.subr.mxu0 0.0
        %1590 = vmatpush1.msra.mxu0 0.0
        %1591 = vmatprep.subr.mxu0 0.0
        %1592 = vmatpush1.msra.mxu0 0.0
        %1593 = vmatprep.subr.mxu0 0.0
        %1594 = vmatpush1.msra.mxu0 0.0
        %1595 = vmatprep.subr.mxu0 0.0
        %1596 = vmatpush1.msra.mxu0 0.0
        %1597 = vmatprep.subr.mxu0 0.0
        %1598 = vmatpush1.msra.mxu0 0.0
        %1599 = vmatprep.subr.mxu0 0.0
        %1600 = vmatpush1.msra.mxu0 0.0
        %1601 = vmatprep.subr.mxu0 0.0
        %1602 = vmatpush1.msra.mxu0 0.0
        %1603 = vmatprep.subr.mxu0 0.0
        %1604 = vmatpush1.msra.mxu0 0.0
        %1605 = vmatprep.subr.mxu0 0.0
        %1606 = vmatpush1.msra.mxu0 0.0
        %1607 = vmatprep.subr.mxu0 0.0
        %1608 = vmatpush1.msra.mxu0 0.0
        %1609 = vmatprep.subr.mxu0 0.0
        %1610 = vmatpush1.msra.mxu0 0.0
        %1611 = vmatprep.mubr.f32.mxu0 0.0
        %1612 = vmatmul.mubr.f32.gmra.mrb[0].mxu0 %v1545
        %v1613 = vpop.f32.mrb[0].mxu0
        %v1614 = vadd.f32 %v1542, %v1613
        %v1615 = vpop.f32.mrb[0].mxu0
        %1616 = vdwg.mxu0
        %v1617 = vmax.f32 %v1614, 0.0
        %v1618 = vld [vmem:[%s11] sm:$0x1]
        %v1620 = vlaneseq
        %v1621 = vshrl.u32 %v1620, 7
        %v1622 = vsub.s32 0, %v1621
        %v1623 = vrot.slane %v1618, %v1622
        %v1625 = vmul.f32 %v1617, %v1623
        %v1626 = vsel %vm1256, %v1625, 0.0
        %1627 = vadd.xlane.f32.xlu0 %v1626
        %v1628 = vpop.xlane.xlu0 %1627
        %v1629 = vld [vmem:[#allocation2] sm:$0x1]
        %v1631 = vlaneseq
        %v1632 = vshrl.u32 %v1631, 7
        %v1633 = vsub.s32 0, %v1632
        %v1634 = vrot.slane %v1629, %v1633
        %v1636 = vadd.f32 %v1628, %v1634
        %v1637 = vxor.u32 %v1636, 2147483648
        %v1638 = vmul.f32 %v1637, 1.442695
        %v1639 = vpow.pop %v1638
        %v1640 = vadd.f32 %v1639, 1.0
        %v1641 = vrcp.pop %v1640
        %v1642 = vmul.f32 1.0, %v1641
        %1644 = vset.pattern.permute.xlu0 0
        %1645 = vperm.xlu0 %1644, %v1642
        %v1646 = vpop.permute.xlu0 %1645
        %1648 = vst [vmem:[%s451] sm:$0xff] %v1646
        %s1649 = sand.u32 %s320, 1
        %s1650 = scalar_lea.sflag [#allocation4], %s1649
        %s1651 = sand.u32 %s320, 1
        %s1652 = smul.addr %s1651, 8
        %s1653 = scalar_lea.vmem [#allocation3], %s1652
        // Predicated region
        $region73: #{tpu_custom_call.1} parent=71 // pred_check
          %p1654 = pneg %p330
        $region74: #{tpu_custom_call.1} parent=71 // pred_check_branch
          %1656 = sbr.rel (%p1654) target = $region76
        $region75: #{tpu_custom_call.1} parent=71 // pred_region
          %s1658 = ssub.s32 128, 128
          %1659 = vsyncadd %s1650, %s1658
          %s1660 = smul.addr %s29, 128
          %s1661 = scalar_lea.hbm %s13, %s1660
          %s1663 = sshll.u32 %s1653, 4
          %s1664 = int_to_ptr.vmem [resolvable:$true] %s1663
          %1666 = dma.vmem_to_hbm [thread:$0]  %s1664, 128, %s1661, %s1650
        $region76: #{tpu_custom_call.1} parent=71 // pred_fallthru
          _
      $region72: #{tpu_custom_call.1} parent=5 // pred_fallthru
        _
      %p1667 = scmp.le.s32.totalorder 2, %s24
      // Predicated region
      $region77: #{tpu_custom_call.1} parent=5 // pred_check
        %p1668 = pneg %p1667
      $region78: #{tpu_custom_call.1} parent=5 // pred_check_branch
        %1670 = sbr.rel (%p1668) target = $region80
      $region79: #{tpu_custom_call.1} parent=5 // pred_region
        %s1671 = ssub.s32 %s24, 2
        // Predicated region
        $region81: #{tpu_custom_call.1} parent=79 // pred_check
          %p1672 = pneg %p336
        $region82: #{tpu_custom_call.1} parent=79 // pred_check_branch
          %1674 = sbr.rel (%p1672) target = $region84
        $region83: #{tpu_custom_call.1} parent=79 // pred_region
          %s1675 = sand.u32 %s321, 1
          %s1676 = scalar_lea.sflag [#allocation4], %s1675
          %s1677 = sand.u32 %s321, 1
          %s1678 = smul.addr %s1677, 8
          %s1679 = scalar_lea.vmem [#allocation3], %s1678
          %1680 = dma.done %s1676, 128
        $region84: #{tpu_custom_call.1} parent=79 // pred_fallthru
          _
      $region80: #{tpu_custom_call.1} parent=5 // pred_fallthru
        _
    $region6: #{tpu_custom_call.1} parent=1 // loop_footer
      %s28 = sadd.s32 1, %s24
    $region7: #{tpu_custom_call.1} parent=1 // loop_footer_branch
      %23 = sbr.rel target = $region3
    $region8: #{tpu_custom_call.1} parent=1 // loop_exit
      _
    %1681 = vsyncpa [#allocation4], 1
    %s1682 = scalar_lea.sflag [#allocation4], 1
    %1683 = vsyncpa %s1682, 1

</llo_original>
